<compile_context>
chip_gen: v6e
topology: v6e:2x2x1
jax: 0.10.0
libtpu: 0.0.40
codegen_flags: <defaults>
</compile_context>

<pallas_src>
import functools

import jax
import jax.numpy as jnp
from jax import lax
from jax.experimental import pallas as pl
from jax.experimental.pallas import tpu as pltpu

KSIZE = 7
PAD = KSIZE // 2


def cbam_kernel(x_ref, w1_ref, w2t_ref, bsp_ref, o_ref, *, H, W, C):
    # x_ref block: (1, H, W*C), lane index l = j*C + c (NHWC flattened per row).
    WC = W * C
    x2 = x_ref[0].astype(jnp.float32)            # (H, WC)  lane-dense load
    x3 = x2.reshape(H, W, C)                     # (H, W, C) compute view

    # ---------------- channel attention ----------------
    sum_wc = jnp.sum(x3, axis=0)                                  # (W, C)
    max_wc = jnp.max(x3, axis=0)                                  # (W, C)
    avg_c = jnp.sum(sum_wc, axis=0, keepdims=True) * (1.0 / (H * W))  # (1, C)
    max_c = jnp.max(max_wc, axis=0, keepdims=True)                    # (1, C)
    pooled = avg_c + max_c                                            # (1, C)

    # Tiny MLP on the VPU (C, Cr far below one MXU pass; avoids MXU latency).
    h = jnp.sum(w1_ref[...] * pooled, axis=1, keepdims=True)     # (Cr, 1)
    h = jnp.maximum(h, 0.0)                                       # ReLU
    ca = jax.nn.sigmoid(jnp.sum(w2t_ref[...] * h, axis=0, keepdims=True))  # (1, C)

    x_ca = x3 * ca.reshape(1, 1, C)                               # (H, W, C)

    # ---------------- spatial attention ----------------
    avg_sp = jnp.sum(x_ca, axis=2) * (1.0 / C)                    # (H, W)
    max_sp = jnp.max(x_ca, axis=2)                                # (H, W)

    # 7x7 conv (cross-correlation, zero pad) as:
    #   sum over row offsets di of  row_shift(map, di) @ banded_col_weights(di)
    # The banded (W, W) operators for both input maps are precomputed in the
    # wrapper and stacked into bsp_ref: (2*KSIZE*W, W).
    zpad = jnp.zeros((PAD, W), jnp.float32)
    pieces = []
    for sp_map in (avg_sp, max_sp):                               # m = 0 (avg), 1 (max)
        padded = jnp.concatenate([zpad, sp_map, zpad], axis=0)    # (H + 2*PAD, W)
        for ki in range(KSIZE):
            # output row i reads input row i + (ki - PAD); zero padding is free.
            pieces.append(padded[ki:ki + H, :])                   # (H, W)
    mstack = jnp.concatenate(pieces, axis=1)                      # (H, 2*KSIZE*W)
    conv = jnp.dot(mstack, bsp_ref[...],
                   preferred_element_type=jnp.float32)            # (H, W)
    sa = jax.nn.sigmoid(conv)                                     # (H, W)

    out = x_ca * sa[:, :, None]                                   # (H, W, C)
    o_ref[0] = out.reshape(H, WC).astype(o_ref.dtype)             # lane-dense store


def _build_spatial_operator(w_sp, W):
    """Banded column-weight operator for the 7x7 spatial conv.

    Depends only on the conv weights and W, so it is hoisted out of the kernel.
    Returns (2*KSIZE*W, W) f32; row block (m*KSIZE + ki) holds
    B[j_src, j_out] = w_sp[0, m, ki, j_src - j_out + PAD] (0 outside the band).
    """
    j_src = jnp.arange(W)[:, None]
    j_out = jnp.arange(W)[None, :]
    rel = j_src - j_out + PAD                     # (W, W)
    valid = (rel >= 0) & (rel < KSIZE)
    rel_c = jnp.clip(rel, 0, KSIZE - 1)
    blocks = []
    for m in range(2):                            # 0 = avg map, 1 = max map
        for ki in range(KSIZE):
            wrow = w_sp[0, m, ki].astype(jnp.float32)             # (KSIZE,)
            blocks.append(jnp.where(valid, wrow[rel_c], 0.0))     # (W, W)
    return jnp.concatenate(blocks, axis=0)        # (2*KSIZE*W, W)


def init_cbam_params(key, channels, reduction=16, kernel_size=KSIZE):
    cr = max(channels // reduction, 1)
    k1, k2, k3 = jax.random.split(key, 3)
    w1 = jax.random.normal(k1, (cr, channels), jnp.float32) * (2.0 / channels) ** 0.5
    w2 = jax.random.normal(k2, (channels, cr), jnp.float32) * (2.0 / cr) ** 0.5
    w_sp = jax.random.normal(k3, (1, 2, kernel_size, kernel_size), jnp.float32) * 0.1
    return w1, w2, w_sp


def cbam_pallas(x, w1, w2, w_sp):
    N, C, H, W = x.shape
    Cr = w1.shape[0]
    WC = W * C

    # glue: layout plumbing + hoisted weight preprocessing (batch-invariant)
    x_flat = jnp.transpose(x, (0, 2, 3, 1)).reshape(N, H, WC)     # (N, H, W*C)
    w1f = w1.astype(jnp.float32)                                  # (Cr, C)
    w2t = w2.T.astype(jnp.float32)                                # (Cr, C)
    bsp = _build_spatial_operator(w_sp, W)                        # (2*KSIZE*W, W)

    kernel = functools.partial(cbam_kernel, H=H, W=W, C=C)
    out_flat = pl.pallas_call(
        kernel,
        out_shape=jax.ShapeDtypeStruct((N, H, WC), x.dtype),
        grid=(N,),
        in_specs=[
            pl.BlockSpec((1, H, WC), lambda n: (n, 0, 0)),
            pl.BlockSpec((Cr, C), lambda n: (0, 0)),
            pl.BlockSpec((Cr, C), lambda n: (0, 0)),
            pl.BlockSpec((2 * KSIZE * W, W), lambda n: (0, 0)),
        ],
        out_specs=pl.BlockSpec((1, H, WC), lambda n: (n, 0, 0)),
        compiler_params=pltpu.CompilerParams(
            dimension_semantics=("parallel",)),
    )(x_flat, w1f, w2t, bsp)

    return out_flat.reshape(N, H, W, C).transpose(0, 3, 1, 2)


def cbam_reference(x, w1, w2, w_sp):
    """Pure-JAX reference matching the PyTorch module semantics (NCHW)."""
    avg_pool = jnp.mean(x, axis=(2, 3), keepdims=True)
    max_pool = jnp.max(x, axis=(2, 3), keepdims=True)
    p = avg_pool + max_pool
    h = jax.nn.relu(jnp.einsum('oc,nchw->nohw', w1, p))
    ca = jax.nn.sigmoid(jnp.einsum('oc,nchw->nohw', w2, h))
    x = x * ca
    avg_out = jnp.mean(x, axis=1, keepdims=True)
    max_out = jnp.max(x, axis=1, keepdims=True)
    s_in = jnp.concatenate([avg_out, max_out], axis=1)
    sa = lax.conv_general_dilated(
        s_in, w_sp, window_strides=(1, 1),
        padding=((PAD, PAD), (PAD, PAD)),
        dimension_numbers=('NCHW', 'OIHW', 'NCHW'))
    sa = jax.nn.sigmoid(sa)
    return x * sa


if __name__ == "__main__":
    key = jax.random.PRNGKey(0)
    kx, kp = jax.random.split(key)

    N, C, H, W = 2, 32, 16, 16          # channels=32, reduction=16 -> hidden=2
    reduction = 16

    x = jax.random.normal(kx, (N, C, H, W), jnp.float32)
    w1, w2, w_sp = init_cbam_params(kp, C, reduction, KSIZE)

    y = cbam_pallas(x, w1, w2, w_sp)
    y = jax.block_until_ready(y)

    y_ref = cbam_reference(x, w1, w2, w_sp)
    assert y.shape == x.shape
    if not jnp.allclose(y, y_ref, atol=2e-3, rtol=2e-3):
        max_err = float(jnp.max(jnp.abs(y - y_ref)))
        raise AssertionError(f"mismatch vs reference, max abs err {max_err}")

    print("KERNEL_OK")
</pallas_src>

<mosaic_0001>
module attributes {stable_mosaic.version = 11 : i64} {
  func.func @cbam_kernel(%arg0: i32, %arg1: memref<1x16x512xf32, #tpu.memory_space<vmem>>, %arg2: memref<2x32xf32, #tpu.memory_space<vmem>>, %arg3: memref<2x32xf32, #tpu.memory_space<vmem>>, %arg4: memref<224x16xf32, #tpu.memory_space<vmem>>, %arg5: memref<1x16x512xf32, #tpu.memory_space<vmem>>) attributes {dimension_semantics = [#tpu.dimension_semantics<parallel>], iteration_bounds = array<i64: 2>, scalar_prefetch = 0 : i64, scratch_operands = 0 : i64, tpu.core_type = #tpu.core_type<tc>, window_params = [{transform_indices = @transform_0, window_bounds = array<i64: 1, 16, 512>}, {pipeline_mode = #tpu.pipeline_mode<synchronous>, transform_indices = @transform_1, window_bounds = array<i64: 2, 32>}, {pipeline_mode = #tpu.pipeline_mode<synchronous>, transform_indices = @transform_2, window_bounds = array<i64: 2, 32>}, {pipeline_mode = #tpu.pipeline_mode<synchronous>, transform_indices = @transform_3, window_bounds = array<i64: 224, 16>}, {transform_indices = @transform_4, window_bounds = array<i64: 1, 16, 512>}]} {
    %c0 = arith.constant 0 : index
    %c0_0 = arith.constant 0 : index
    %c0_1 = arith.constant 0 : index
    %0 = vector.load %arg1[%c0, %c0_0, %c0_1] : memref<1x16x512xf32, #tpu.memory_space<vmem>>, vector<1x16x512xf32>
    %1 = vector.shape_cast %0 : vector<1x16x512xf32> to vector<16x512xf32>
    %2 = vector.shape_cast %1 : vector<16x512xf32> to vector<16x16x32xf32>
    %cst = arith.constant dense<0.000000e+00> : vector<16x32xf32>
    %3 = vector.multi_reduction <add>, %2, %cst [0] : vector<16x16x32xf32> to vector<16x32xf32>
    %cst_2 = arith.constant dense<0xFF800000> : vector<16x32xf32>
    %4 = vector.multi_reduction <maximumf>, %2, %cst_2 [0] : vector<16x16x32xf32> to vector<16x32xf32>
    %cst_3 = arith.constant dense<0.000000e+00> : vector<32xf32>
    %5 = vector.multi_reduction <add>, %3, %cst_3 [0] : vector<16x32xf32> to vector<32xf32>
    %6 = vector.shape_cast %5 : vector<32xf32> to vector<1x32xf32>
    %cst_4 = arith.constant 3.906250e-03 : f32
    %7 = vector.broadcast %cst_4 : f32 to vector<1x32xf32>
    %8 = arith.mulf %6, %7 : vector<1x32xf32>
    %cst_5 = arith.constant dense<0xFF800000> : vector<32xf32>
    %9 = vector.multi_reduction <maximumf>, %4, %cst_5 [0] : vector<16x32xf32> to vector<32xf32>
    %10 = vector.shape_cast %9 : vector<32xf32> to vector<1x32xf32>
    %11 = arith.addf %8, %10 : vector<1x32xf32>
    %c0_6 = arith.constant 0 : index
    %c0_7 = arith.constant 0 : index
    %12 = vector.load %arg2[%c0_6, %c0_7] : memref<2x32xf32, #tpu.memory_space<vmem>>, vector<2x32xf32>
    %13 = vector.broadcast %11 : vector<1x32xf32> to vector<2x32xf32>
    %14 = arith.mulf %12, %13 : vector<2x32xf32>
    %cst_8 = arith.constant dense<0.000000e+00> : vector<2xf32>
    %15 = vector.multi_reduction <add>, %14, %cst_8 [1] : vector<2x32xf32> to vector<2xf32>
    %16 = vector.shape_cast %15 : vector<2xf32> to vector<2x1xf32>
    %cst_9 = arith.constant 0.000000e+00 : f32
    %17 = vector.broadcast %cst_9 : f32 to vector<2x1xf32>
    %18 = arith.maximumf %16, %17 : vector<2x1xf32>
    %c0_10 = arith.constant 0 : index
    %c0_11 = arith.constant 0 : index
    %19 = vector.load %arg3[%c0_10, %c0_11] : memref<2x32xf32, #tpu.memory_space<vmem>>, vector<2x32xf32>
    %20 = vector.broadcast %18 : vector<2x1xf32> to vector<2x32xf32>
    %21 = arith.mulf %19, %20 : vector<2x32xf32>
    %cst_12 = arith.constant dense<0.000000e+00> : vector<32xf32>
    %22 = vector.multi_reduction <add>, %21, %cst_12 [0] : vector<2x32xf32> to vector<32xf32>
    %23 = vector.shape_cast %22 : vector<32xf32> to vector<1x32xf32>
    %24 = arith.negf %23 : vector<1x32xf32>
    %25 = math.exp %24 : vector<1x32xf32>
    %cst_13 = arith.constant 1.000000e+00 : f32
    %26 = vector.broadcast %cst_13 : f32 to vector<1x32xf32>
    %27 = arith.addf %26, %25 : vector<1x32xf32>
    %28 = arith.divf %26, %27 : vector<1x32xf32>
    %29 = vector.shape_cast %28 : vector<1x32xf32> to vector<1x1x32xf32>
    %30 = vector.broadcast %29 : vector<1x1x32xf32> to vector<16x16x32xf32>
    %31 = arith.mulf %2, %30 : vector<16x16x32xf32>
    %cst_14 = arith.constant dense<0.000000e+00> : vector<16x16xf32>
    %32 = vector.multi_reduction <add>, %31, %cst_14 [2] : vector<16x16x32xf32> to vector<16x16xf32>
    %cst_15 = arith.constant 3.125000e-02 : f32
    %33 = vector.broadcast %cst_15 : f32 to vector<16x16xf32>
    %34 = arith.mulf %32, %33 : vector<16x16xf32>
    %cst_16 = arith.constant dense<0xFF800000> : vector<16x16xf32>
    %35 = vector.multi_reduction <maximumf>, %31, %cst_16 [2] : vector<16x16x32xf32> to vector<16x16xf32>
    %cst_17 = arith.constant 0.000000e+00 : f32
    %36 = vector.broadcast %cst_17 : f32 to vector<3x16xf32>
    %37 = tpu.concatenate %36, %34, %36 in 0 : vector<3x16xf32>, vector<16x16xf32>, vector<3x16xf32> -> vector<22x16xf32>
    %38 = vector.extract_strided_slice %37 {offsets = [0, 0], sizes = [16, 16], strides = [1, 1]} : vector<22x16xf32> to vector<16x16xf32>
    %39 = vector.extract_strided_slice %37 {offsets = [1, 0], sizes = [16, 16], strides = [1, 1]} : vector<22x16xf32> to vector<16x16xf32>
    %40 = vector.extract_strided_slice %37 {offsets = [2, 0], sizes = [16, 16], strides = [1, 1]} : vector<22x16xf32> to vector<16x16xf32>
    %41 = vector.extract_strided_slice %37 {offsets = [3, 0], sizes = [16, 16], strides = [1, 1]} : vector<22x16xf32> to vector<16x16xf32>
    %42 = vector.extract_strided_slice %37 {offsets = [4, 0], sizes = [16, 16], strides = [1, 1]} : vector<22x16xf32> to vector<16x16xf32>
    %43 = vector.extract_strided_slice %37 {offsets = [5, 0], sizes = [16, 16], strides = [1, 1]} : vector<22x16xf32> to vector<16x16xf32>
    %44 = vector.extract_strided_slice %37 {offsets = [6, 0], sizes = [16, 16], strides = [1, 1]} : vector<22x16xf32> to vector<16x16xf32>
    %45 = tpu.concatenate %36, %35, %36 in 0 : vector<3x16xf32>, vector<16x16xf32>, vector<3x16xf32> -> vector<22x16xf32>
    %46 = vector.extract_strided_slice %45 {offsets = [0, 0], sizes = [16, 16], strides = [1, 1]} : vector<22x16xf32> to vector<16x16xf32>
    %47 = vector.extract_strided_slice %45 {offsets = [1, 0], sizes = [16, 16], strides = [1, 1]} : vector<22x16xf32> to vector<16x16xf32>
    %48 = vector.extract_strided_slice %45 {offsets = [2, 0], sizes = [16, 16], strides = [1, 1]} : vector<22x16xf32> to vector<16x16xf32>
    %49 = vector.extract_strided_slice %45 {offsets = [3, 0], sizes = [16, 16], strides = [1, 1]} : vector<22x16xf32> to vector<16x16xf32>
    %50 = vector.extract_strided_slice %45 {offsets = [4, 0], sizes = [16, 16], strides = [1, 1]} : vector<22x16xf32> to vector<16x16xf32>
    %51 = vector.extract_strided_slice %45 {offsets = [5, 0], sizes = [16, 16], strides = [1, 1]} : vector<22x16xf32> to vector<16x16xf32>
    %52 = vector.extract_strided_slice %45 {offsets = [6, 0], sizes = [16, 16], strides = [1, 1]} : vector<22x16xf32> to vector<16x16xf32>
    %53 = tpu.concatenate %38, %39, %40, %41, %42, %43, %44, %46, %47, %48, %49, %50, %51, %52 in 1 : vector<16x16xf32>, vector<16x16xf32>, vector<16x16xf32>, vector<16x16xf32>, vector<16x16xf32>, vector<16x16xf32>, vector<16x16xf32>, vector<16x16xf32>, vector<16x16xf32>, vector<16x16xf32>, vector<16x16xf32>, vector<16x16xf32>, vector<16x16xf32>, vector<16x16xf32> -> vector<16x224xf32>
    %c0_18 = arith.constant 0 : index
    %c0_19 = arith.constant 0 : index
    %54 = vector.load %arg4[%c0_18, %c0_19] : memref<224x16xf32, #tpu.memory_space<vmem>>, vector<224x16xf32>
    %cst_20 = arith.constant dense<0.000000e+00> : vector<16x16xf32>
    %55 = tpu.matmul %53, %54, %cst_20 {dimension_numbers = #tpu.dot_dimension_numbers<[1], [0], [0], [1], [0, 0, 1, 1], [], []>} : vector<16x224xf32>, vector<224x16xf32>, vector<16x16xf32> -> vector<16x16xf32>
    %56 = arith.negf %55 : vector<16x16xf32>
    %57 = math.exp %56 : vector<16x16xf32>
    %cst_21 = arith.constant 1.000000e+00 : f32
    %58 = vector.broadcast %cst_21 : f32 to vector<16x16xf32>
    %59 = arith.addf %58, %57 : vector<16x16xf32>
    %60 = arith.divf %58, %59 : vector<16x16xf32>
    %61 = vector.shape_cast %60 : vector<16x16xf32> to vector<16x16x1xf32>
    %62 = vector.broadcast %61 : vector<16x16x1xf32> to vector<16x16x32xf32>
    %63 = arith.mulf %31, %62 : vector<16x16x32xf32>
    %64 = vector.shape_cast %63 : vector<16x16x32xf32> to vector<16x512xf32>
    %c0_22 = arith.constant 0 : index
    %c0_23 = arith.constant 0 : index
    %c0_24 = arith.constant 0 : index
    %65 = vector.load %arg5[%c0_22, %c0_23, %c0_24] : memref<1x16x512xf32, #tpu.memory_space<vmem>>, vector<1x16x512xf32>
    %66 = vector.shape_cast %65 : vector<1x16x512xf32> to vector<16x512xf32>
    %67 = vector.shape_cast %64 : vector<16x512xf32> to vector<1x16x512xf32>
    tpu.vector_store %arg5[%c0_22, %c0_23, %c0_24], %67 {strides = array<i32>} : memref<1x16x512xf32, #tpu.memory_space<vmem>>, vector<1x16x512xf32>,
    return
  }
  func.func @transform_0(%arg0: i32) -> (i32, i32, i32) {
    %c0_i32 = arith.constant 0 : i32
    %c0_i32_0 = arith.constant 0 : i32
    %c0_i32_1 = arith.constant 0 : i32
    return %arg0, %c0_i32, %c0_i32_0 : i32, i32, i32
  }
  func.func @transform_1(%arg0: i32) -> (i32, i32) {
    %c0_i32 = arith.constant 0 : i32
    %c0_i32_0 = arith.constant 0 : i32
    %c0_i32_1 = arith.constant 0 : i32
    return %c0_i32, %c0_i32_0 : i32, i32
  }
  func.func @transform_2(%arg0: i32) -> (i32, i32) {
    %c0_i32 = arith.constant 0 : i32
    %c0_i32_0 = arith.constant 0 : i32
    %c0_i32_1 = arith.constant 0 : i32
    return %c0_i32, %c0_i32_0 : i32, i32
  }
  func.func @transform_3(%arg0: i32) -> (i32, i32) {
    %c0_i32 = arith.constant 0 : i32
    %c0_i32_0 = arith.constant 0 : i32
    %c0_i32_1 = arith.constant 0 : i32
    return %c0_i32, %c0_i32_0 : i32, i32
  }
  func.func @transform_4(%arg0: i32) -> (i32, i32, i32) {
    %c0_i32 = arith.constant 0 : i32
    %c0_i32_0 = arith.constant 0 : i32
    %c0_i32_1 = arith.constant 0 : i32
    return %arg0, %c0_i32, %c0_i32_0 : i32, i32, i32
  }
}

</mosaic_0001>

<llo_original>
// kernel: tpu_custom_call.1
$region0: #{tpu_custom_call.1}
  #allocation0 [shape = 'u32[]', space=smem, size = 0x4, offset = 0x4, fixed_abs, tag = 'smem constant byte address 0x4 - core index']
  #allocation1 [shape = 'u32[144,128]{1,0:T(1,128)}', space=vmem, size = 0x12000, scoped, tag = 'internal scratch']
  %s0 = inlined_call_operand.vmem [shape: f32[2,16,512], index: 0, kind: input, shape index: {}]
  %s1 = inlined_call_operand.vmem [shape: f32[2,32], index: 1, kind: input, shape index: {}]
  %s2 = inlined_call_operand.vmem [shape: f32[2,32], index: 2, kind: input, shape index: {}]
  %s3 = inlined_call_operand.vmem [shape: f32[224,16], index: 3, kind: input, shape index: {}]
  %s4 = inlined_call_operand.hbm [shape: f32[2,16,512], index: 4, kind: output, shape index: {}]
  %s5 = sld [smem:[#allocation0]]
  $region49: #{tpu_custom_call.1} parent=0
    _
  %s7 = ssub.s32 1, %s5
  %s8 = scalar_select 0, %s7, %s5
  $region1: #{tpu_custom_call.1} parent=0
    #allocation2 [shape = 'u8[65536]{0}', space=vmem, size = 0x10000, scoped, tag = 'output window, operand 0']
    #allocation3 [shape = 's32[2]{0}', space=sflag, size = 0x8, scoped, tag = 'scoped memory for tpu_custom_call.1']
    %9 = vsyncpa [#allocation3], 0
    %s10 = scalar_lea.sflag [#allocation3], 1
    %11 = vsyncpa %s10, 0
    loop: start=0, step=1, limit=4
    $region2: #{tpu_custom_call.1} parent=1 // loop_pre_header
      _
    $region3: #{tpu_custom_call.1} parent=1 // loop_header
      %s13 = sphi 0, %s17
      %p14 = scmp.ge.s32.totalorder %s13, 4
      %s23 = sphi 0, %s25
      %s26 = sphi 0, %s23
      %s27 = sphi 0, %s26
      %s43 = sphi 0, %s27
      %s47 = sphi 0, %s47
      %s49 = sphi 0, %s47
      %s50 = sphi 0, %s49
      %s64 = sphi 0, %s50
      %s68 = sphi 0, %s68
      %s70 = sphi 0, %s68
      %s71 = sphi 0, %s70
      %s85 = sphi 0, %s71
      %s89 = sphi 0, %s89
      %s91 = sphi 0, %s89
      %s92 = sphi 0, %s91
      %s106 = sphi 0, %s92
      %s112 = sphi 0, %s114
      %s115 = sphi 0, %s112
      %s116 = sphi 0, %s115
      %s132 = sphi 0, %s116
    $region4: #{tpu_custom_call.1} parent=1 // loop_header_branch
      %16 = sbr.rel (%p14) target = $region8
    $region5: #{tpu_custom_call.1} parent=1 // loop_body
      %s18 = ssub.s32 %s13, 1
      %s19 = ssub.s32 %s13, 2
      %s20 = sadd.s32 %s13, 1
      %s21 = ssub.s32 %s13, %s20
      %p22 = scmp.eq.s32.totalorder %s21, 0
      %s24 = sadd.s32 %s23, 1
      %s25 = scalar_select %p22, %s23, %s24
      %p28 = pneg %p22
      %p29 = scmp.eq.s32.totalorder %s13, 1
      %p30 = por %p28, %p29
      %p31 = scmp.ne.s32.totalorder %s23, %s26
      %p32 = scmp.eq.s32.totalorder %s13, 0
      %p33 = por %p31, %p32
      %p34 = scmp.ne.s32.totalorder %s23, %s26
      %p35 = scmp.eq.s32.totalorder %s18, 1
      %p36 = por %p34, %p35
      %p37 = scmp.ne.s32.totalorder %s26, %s27
      %p38 = scmp.eq.s32.totalorder %s18, 0
      %p39 = por %p37, %p38
      %p40 = scmp.ne.s32.totalorder %s26, %s27
      %p41 = scmp.eq.s32.totalorder %s19, 1
      %p42 = por %p40, %p41
      %p44 = scmp.ne.s32.totalorder %s27, %s43
      %p45 = scmp.eq.s32.totalorder %s19, 0
      %p46 = por %p44, %p45
      %s48 = sadd.s32 %s47, 1
      %p51 = scmp.eq.s32.totalorder %s13, 1
      %p52 = scmp.ne.s32.totalorder %s47, %s49
      %p53 = scmp.eq.s32.totalorder %s13, 0
      %p54 = por %p52, %p53
      %p55 = scmp.ne.s32.totalorder %s47, %s49
      %p56 = scmp.eq.s32.totalorder %s18, 1
      %p57 = por %p55, %p56
      %p58 = scmp.ne.s32.totalorder %s49, %s50
      %p59 = scmp.eq.s32.totalorder %s18, 0
      %p60 = por %p58, %p59
      %p61 = scmp.ne.s32.totalorder %s49, %s50
      %p62 = scmp.eq.s32.totalorder %s19, 1
      %p63 = por %p61, %p62
      %p65 = scmp.ne.s32.totalorder %s50, %s64
      %p66 = scmp.eq.s32.totalorder %s19, 0
      %p67 = por %p65, %p66
      %s69 = sadd.s32 %s68, 1
      %p72 = scmp.eq.s32.totalorder %s13, 1
      %p73 = scmp.ne.s32.totalorder %s68, %s70
      %p74 = scmp.eq.s32.totalorder %s13, 0
      %p75 = por %p73, %p74
      %p76 = scmp.ne.s32.totalorder %s68, %s70
      %p77 = scmp.eq.s32.totalorder %s18, 1
      %p78 = por %p76, %p77
      %p79 = scmp.ne.s32.totalorder %s70, %s71
      %p80 = scmp.eq.s32.totalorder %s18, 0
      %p81 = por %p79, %p80
      %p82 = scmp.ne.s32.totalorder %s70, %s71
      %p83 = scmp.eq.s32.totalorder %s19, 1
      %p84 = por %p82, %p83
      %p86 = scmp.ne.s32.totalorder %s71, %s85
      %p87 = scmp.eq.s32.totalorder %s19, 0
      %p88 = por %p86, %p87
      %s90 = sadd.s32 %s89, 1
      %p93 = scmp.eq.s32.totalorder %s13, 1
      %p94 = scmp.ne.s32.totalorder %s89, %s91
      %p95 = scmp.eq.s32.totalorder %s13, 0
      %p96 = por %p94, %p95
      %p97 = scmp.ne.s32.totalorder %s89, %s91
      %p98 = scmp.eq.s32.totalorder %s18, 1
      %p99 = por %p97, %p98
      %p100 = scmp.ne.s32.totalorder %s91, %s92
      %p101 = scmp.eq.s32.totalorder %s18, 0
      %p102 = por %p100, %p101
      %p103 = scmp.ne.s32.totalorder %s91, %s92
      %p104 = scmp.eq.s32.totalorder %s19, 1
      %p105 = por %p103, %p104
      %p107 = scmp.ne.s32.totalorder %s92, %s106
      %p108 = scmp.eq.s32.totalorder %s19, 0
      %p109 = por %p107, %p108
      %s110 = ssub.s32 %s13, %s20
      %p111 = scmp.eq.s32.totalorder %s110, 0
      %s113 = sadd.s32 %s112, 1
      %s114 = scalar_select %p111, %s112, %s113
      %p117 = pneg %p111
      %p118 = scmp.eq.s32.totalorder %s13, 1
      %p119 = por %p117, %p118
      %p120 = scmp.ne.s32.totalorder %s112, %s115
      %p121 = scmp.eq.s32.totalorder %s13, 0
      %p122 = por %p120, %p121
      %p123 = scmp.ne.s32.totalorder %s112, %s115
      %p124 = scmp.eq.s32.totalorder %s18, 1
      %p125 = por %p123, %p124
      %p126 = scmp.ne.s32.totalorder %s115, %s116
      %p127 = scmp.eq.s32.totalorder %s18, 0
      %p128 = por %p126, %p127
      %p129 = scmp.ne.s32.totalorder %s115, %s116
      %p130 = scmp.eq.s32.totalorder %s19, 1
      %p131 = por %p129, %p130
      %p133 = scmp.ne.s32.totalorder %s116, %s132
      %p134 = scmp.eq.s32.totalorder %s19, 0
      %p135 = por %p133, %p134
      %p136 = scmp.le.s32.totalorder 1, %s13
      %p137 = scmp.lt.s32.totalorder %s13, 3
      %p138 = pnand %p136, %p137
      %p139 = pneg %p138
      // Predicated region
      $region9: #{tpu_custom_call.1} parent=5 // pred_check
        _
      $region10: #{tpu_custom_call.1} parent=5 // pred_check_branch
        %141 = sbr.rel (%p138) target = $region12
      $region11: #{tpu_custom_call.1} parent=5 // pred_region
        %s142 = ssub.s32 %s13, 1
        // Predicated region
        $region13: #{tpu_custom_call.1} parent=11 // pred_check
          %p143 = pneg %p60
        $region14: #{tpu_custom_call.1} parent=11 // pred_check_branch
          %145 = sbr.rel (%p143) target = $region16
        $region15: #{tpu_custom_call.1} parent=11 // pred_region
          _
        $region16: #{tpu_custom_call.1} parent=11 // pred_fallthru
          _
        // Predicated region
        $region17: #{tpu_custom_call.1} parent=11 // pred_check
          %p146 = pneg %p81
        $region18: #{tpu_custom_call.1} parent=11 // pred_check_branch
          %148 = sbr.rel (%p146) target = $region20
        $region19: #{tpu_custom_call.1} parent=11 // pred_region
          _
        $region20: #{tpu_custom_call.1} parent=11 // pred_fallthru
          _
        // Predicated region
        $region21: #{tpu_custom_call.1} parent=11 // pred_check
          %p149 = pneg %p102
        $region22: #{tpu_custom_call.1} parent=11 // pred_check_branch
          %151 = sbr.rel (%p149) target = $region24
        $region23: #{tpu_custom_call.1} parent=11 // pred_region
          _
        $region24: #{tpu_custom_call.1} parent=11 // pred_fallthru
          _
      $region12: #{tpu_custom_call.1} parent=5 // pred_fallthru
        _
      %p152 = scmp.lt.s32.totalorder %s13, 2
      // Predicated region
      $region25: #{tpu_custom_call.1} parent=5 // pred_check
        %p153 = pneg %p152
      $region26: #{tpu_custom_call.1} parent=5 // pred_check_branch
        %155 = sbr.rel (%p153) target = $region28
      $region27: #{tpu_custom_call.1} parent=5 // pred_region
        // Predicated region
        $region29: #{tpu_custom_call.1} parent=27 // pred_check
          %p156 = pneg %p33
        $region30: #{tpu_custom_call.1} parent=27 // pred_check_branch
          %158 = sbr.rel (%p156) target = $region32
        $region31: #{tpu_custom_call.1} parent=27 // pred_region
          %p159 = scmp.lt.s32.totalorder %s13, 1
          %s160 = scalar_select %p159, %s13, 1
          %s161 = smul.addr %s160, 8
          %s162 = smul.addr %s161, 8
          %s163 = scalar_lea.vmem %s0, %s162
        $region32: #{tpu_custom_call.1} parent=27 // pred_fallthru
          _
      $region28: #{tpu_custom_call.1} parent=5 // pred_fallthru
        _
      %p164 = scmp.le.s32.totalorder 1, %s13
      %p165 = scmp.lt.s32.totalorder %s13, 3
      %p166 = pnand %p164, %p165
      %p167 = pneg %p166
      // Predicated region
      $region33: #{tpu_custom_call.1} parent=5 // pred_check
        _
      $region34: #{tpu_custom_call.1} parent=5 // pred_check_branch
        %169 = sbr.rel (%p166) target = $region36
      $region35: #{tpu_custom_call.1} parent=5 // pred_region
        %s170 = ssub.s32 %s13, 1
        %p171 = scmp.lt.s32.totalorder %s18, 1
        %s172 = scalar_select %p171, %s18, 1
        %s173 = smul.addr %s172, 8
        %s174 = smul.addr %s173, 8
        %s175 = scalar_lea.vmem %s0, %s174
        %p176 = pneg %p39
        %p177 = pneg %p36
        %p178 = pneg %p60
        %p179 = pneg %p57
        %p180 = pneg %p81
        %p181 = pneg %p78
        %p182 = pneg %p102
        %p183 = pneg %p99
        %p184 = pneg %p128
        %p185 = pneg %p125
        %s186 = sand.u32 %s115, 1
        %s187 = scalar_lea.sflag [#allocation3], %s186
        %s188 = sand.u32 %s115, 1
        %s189 = smul.addr %s188, 64
        %s190 = scalar_lea.vmem [#allocation2], %s189
        %p191 = scmp.lt.s32.totalorder %s18, 1
        %s192 = scalar_select %p191, %s18, 1
        %s193 = smul.addr %s192, 8
        %s194 = smul.addr %s193, 8
        %s195 = scalar_lea.vmem %s0, %s194
        %v196 = vld [vmem:[%s195] sm:$0xff]
        %v197 = vld [vmem:[%s195 + $0x8] sm:$0xff]
        %v198 = vld [vmem:[%s195 + $0x10] sm:$0xff]
        %v199 = vld [vmem:[%s195 + $0x18] sm:$0xff]
        %v200 = vld [vmem:[%s195 + $0x20] sm:$0xff]
        %v201 = vld [vmem:[%s195 + $0x28] sm:$0xff]
        %v202 = vld [vmem:[%s195 + $0x30] sm:$0xff]
        %v203 = vld [vmem:[%s195 + $0x38] sm:$0xff]
        %206 = vrot.lane.b32.xlu0 %v196, 96
        %v207 = vpop.permute.xlu0 %206
        %208 = vrot.lane.b32.xlu0 %v200, 96
        %v209 = vpop.permute.xlu0 %208
        %212 = vrot.lane.b32.xlu0 %v196, 64
        %v213 = vpop.permute.xlu0 %212
        %214 = vrot.lane.b32.xlu0 %v200, 64
        %v215 = vpop.permute.xlu0 %214
        %218 = vrot.lane.b32.xlu0 %v196, 32
        %v219 = vpop.permute.xlu0 %218
        %220 = vrot.lane.b32.xlu0 %v200, 32
        %v221 = vpop.permute.xlu0 %220
        %226 = vrot.lane.b32.xlu0 %v197, 96
        %v227 = vpop.permute.xlu0 %226
        %228 = vrot.lane.b32.xlu0 %v201, 96
        %v229 = vpop.permute.xlu0 %228
        %232 = vrot.lane.b32.xlu0 %v197, 64
        %v233 = vpop.permute.xlu0 %232
        %234 = vrot.lane.b32.xlu0 %v201, 64
        %v235 = vpop.permute.xlu0 %234
        %238 = vrot.lane.b32.xlu0 %v197, 32
        %v239 = vpop.permute.xlu0 %238
        %240 = vrot.lane.b32.xlu0 %v201, 32
        %v241 = vpop.permute.xlu0 %240
        %246 = vrot.lane.b32.xlu0 %v198, 96
        %v247 = vpop.permute.xlu0 %246
        %248 = vrot.lane.b32.xlu0 %v202, 96
        %v249 = vpop.permute.xlu0 %248
        %252 = vrot.lane.b32.xlu0 %v198, 64
        %v253 = vpop.permute.xlu0 %252
        %254 = vrot.lane.b32.xlu0 %v202, 64
        %v255 = vpop.permute.xlu0 %254
        %258 = vrot.lane.b32.xlu0 %v198, 32
        %v259 = vpop.permute.xlu0 %258
        %260 = vrot.lane.b32.xlu0 %v202, 32
        %v261 = vpop.permute.xlu0 %260
        %266 = vrot.lane.b32.xlu0 %v199, 96
        %v267 = vpop.permute.xlu0 %266
        %268 = vrot.lane.b32.xlu0 %v203, 96
        %v269 = vpop.permute.xlu0 %268
        %272 = vrot.lane.b32.xlu0 %v199, 64
        %v273 = vpop.permute.xlu0 %272
        %274 = vrot.lane.b32.xlu0 %v203, 64
        %v275 = vpop.permute.xlu0 %274
        %278 = vrot.lane.b32.xlu0 %v199, 32
        %v279 = vpop.permute.xlu0 %278
        %280 = vrot.lane.b32.xlu0 %v203, 32
        %v281 = vpop.permute.xlu0 %280
        %v284 = vcombine.low %v196, %v213
        %v285 = vcombine.high %v196, %v213
        %v287 = vunpack.c.l.s4 1983009808
        %v288 = vunpack.c.0.s8 %v287
        %v289 = vlaneseq
        %v290 = vshrl.u32 %v289, 7
        %v291 = vsub.s32 %v288, %v290
        %v292 = vrot.slane %v284, %v291
        %v294 = vunpack.c.l.s4 1983009808
        %v295 = vunpack.c.0.s8 %v294
        %v296 = vlaneseq
        %v297 = vshrl.u32 %v296, 7
        %v298 = vsub.s32 %v295, %v297
        %v299 = vrot.slane %v285, %v298
        %v300 = vcombine.low %v207, %v219
        %v301 = vcombine.high %v207, %v219
        %v303 = vunpack.c.l.s4 1983009808
        %v304 = vunpack.c.0.s8 %v303
        %v305 = vlaneseq
        %v306 = vshrl.u32 %v305, 7
        %v307 = vsub.s32 %v304, %v306
        %v308 = vrot.slane %v300, %v307
        %v310 = vunpack.c.l.s4 1983009808
        %v311 = vunpack.c.0.s8 %v310
        %v312 = vlaneseq
        %v313 = vshrl.u32 %v312, 7
        %v314 = vsub.s32 %v311, %v313
        %v315 = vrot.slane %v301, %v314
        %v316 = vcombine.low %v197, %v233
        %v317 = vcombine.high %v197, %v233
        %v319 = vunpack.c.l.s4 1983009808
        %v320 = vunpack.c.0.s8 %v319
        %v321 = vlaneseq
        %v322 = vshrl.u32 %v321, 7
        %v323 = vsub.s32 %v320, %v322
        %v324 = vrot.slane %v316, %v323
        %v326 = vunpack.c.l.s4 1983009808
        %v327 = vunpack.c.0.s8 %v326
        %v328 = vlaneseq
        %v329 = vshrl.u32 %v328, 7
        %v330 = vsub.s32 %v327, %v329
        %v331 = vrot.slane %v317, %v330
        %v332 = vcombine.low %v227, %v239
        %v333 = vcombine.high %v227, %v239
        %v335 = vunpack.c.l.s4 1983009808
        %v336 = vunpack.c.0.s8 %v335
        %v337 = vlaneseq
        %v338 = vshrl.u32 %v337, 7
        %v339 = vsub.s32 %v336, %v338
        %v340 = vrot.slane %v332, %v339
        %v342 = vunpack.c.l.s4 1983009808
        %v343 = vunpack.c.0.s8 %v342
        %v344 = vlaneseq
        %v345 = vshrl.u32 %v344, 7
        %v346 = vsub.s32 %v343, %v345
        %v347 = vrot.slane %v333, %v346
        %v348 = vcombine.low %v292, %v308
        %v349 = vcombine.high %v292, %v308
        %v351 = vunpack.c.l.s4 1934713408
        %v352 = vunpack.c.0.s8 %v351
        %v353 = vlaneseq
        %v354 = vshrl.u32 %v353, 7
        %v355 = vsub.s32 %v352, %v354
        %v356 = vrot.slane %v348, %v355
        %v358 = vunpack.c.l.s4 1934713408
        %v359 = vunpack.c.0.s8 %v358
        %v360 = vlaneseq
        %v361 = vshrl.u32 %v360, 7
        %v362 = vsub.s32 %v359, %v361
        %v363 = vrot.slane %v349, %v362
        %v364 = vcombine.low %v299, %v315
        %v365 = vcombine.high %v299, %v315
        %v367 = vunpack.c.l.s4 1934713408
        %v368 = vunpack.c.0.s8 %v367
        %v369 = vlaneseq
        %v370 = vshrl.u32 %v369, 7
        %v371 = vsub.s32 %v368, %v370
        %v372 = vrot.slane %v364, %v371
        %v374 = vunpack.c.l.s4 1934713408
        %v375 = vunpack.c.0.s8 %v374
        %v376 = vlaneseq
        %v377 = vshrl.u32 %v376, 7
        %v378 = vsub.s32 %v375, %v377
        %v379 = vrot.slane %v365, %v378
        %v380 = vcombine.low %v324, %v340
        %v381 = vcombine.high %v324, %v340
        %v383 = vunpack.c.l.s4 1934713408
        %v384 = vunpack.c.0.s8 %v383
        %v385 = vlaneseq
        %v386 = vshrl.u32 %v385, 7
        %v387 = vsub.s32 %v384, %v386
        %v388 = vrot.slane %v380, %v387
        %v390 = vunpack.c.l.s4 1934713408
        %v391 = vunpack.c.0.s8 %v390
        %v392 = vlaneseq
        %v393 = vshrl.u32 %v392, 7
        %v394 = vsub.s32 %v391, %v393
        %v395 = vrot.slane %v381, %v394
        %v396 = vcombine.low %v331, %v347
        %v397 = vcombine.high %v331, %v347
        %v399 = vunpack.c.l.s4 1934713408
        %v400 = vunpack.c.0.s8 %v399
        %v401 = vlaneseq
        %v402 = vshrl.u32 %v401, 7
        %v403 = vsub.s32 %v400, %v402
        %v404 = vrot.slane %v396, %v403
        %v406 = vunpack.c.l.s4 1934713408
        %v407 = vunpack.c.0.s8 %v406
        %v408 = vlaneseq
        %v409 = vshrl.u32 %v408, 7
        %v410 = vsub.s32 %v407, %v409
        %v411 = vrot.slane %v397, %v410
        %v412 = vcombine.low %v356, %v388
        %v413 = vcombine.high %v356, %v388
        %v414 = vcombine.low %v363, %v395
        %v415 = vcombine.high %v363, %v395
        %v416 = vcombine.low %v372, %v404
        %v417 = vcombine.high %v372, %v404
        %v418 = vcombine.low %v379, %v411
        %v419 = vcombine.high %v379, %v411
        %v420 = vcombine.low %v198, %v253
        %v421 = vcombine.high %v198, %v253
        %v423 = vunpack.c.l.s4 1983009808
        %v424 = vunpack.c.0.s8 %v423
        %v425 = vlaneseq
        %v426 = vshrl.u32 %v425, 7
        %v427 = vsub.s32 %v424, %v426
        %v428 = vrot.slane %v420, %v427
        %v430 = vunpack.c.l.s4 1983009808
        %v431 = vunpack.c.0.s8 %v430
        %v432 = vlaneseq
        %v433 = vshrl.u32 %v432, 7
        %v434 = vsub.s32 %v431, %v433
        %v435 = vrot.slane %v421, %v434
        %v436 = vcombine.low %v247, %v259
        %v437 = vcombine.high %v247, %v259
        %v439 = vunpack.c.l.s4 1983009808
        %v440 = vunpack.c.0.s8 %v439
        %v441 = vlaneseq
        %v442 = vshrl.u32 %v441, 7
        %v443 = vsub.s32 %v440, %v442
        %v444 = vrot.slane %v436, %v443
        %v446 = vunpack.c.l.s4 1983009808
        %v447 = vunpack.c.0.s8 %v446
        %v448 = vlaneseq
        %v449 = vshrl.u32 %v448, 7
        %v450 = vsub.s32 %v447, %v449
        %v451 = vrot.slane %v437, %v450
        %v452 = vcombine.low %v199, %v273
        %v453 = vcombine.high %v199, %v273
        %v455 = vunpack.c.l.s4 1983009808
        %v456 = vunpack.c.0.s8 %v455
        %v457 = vlaneseq
        %v458 = vshrl.u32 %v457, 7
        %v459 = vsub.s32 %v456, %v458
        %v460 = vrot.slane %v452, %v459
        %v462 = vunpack.c.l.s4 1983009808
        %v463 = vunpack.c.0.s8 %v462
        %v464 = vlaneseq
        %v465 = vshrl.u32 %v464, 7
        %v466 = vsub.s32 %v463, %v465
        %v467 = vrot.slane %v453, %v466
        %v468 = vcombine.low %v267, %v279
        %v469 = vcombine.high %v267, %v279
        %v471 = vunpack.c.l.s4 1983009808
        %v472 = vunpack.c.0.s8 %v471
        %v473 = vlaneseq
        %v474 = vshrl.u32 %v473, 7
        %v475 = vsub.s32 %v472, %v474
        %v476 = vrot.slane %v468, %v475
        %v478 = vunpack.c.l.s4 1983009808
        %v479 = vunpack.c.0.s8 %v478
        %v480 = vlaneseq
        %v481 = vshrl.u32 %v480, 7
        %v482 = vsub.s32 %v479, %v481
        %v483 = vrot.slane %v469, %v482
        %v484 = vcombine.low %v428, %v444
        %v485 = vcombine.high %v428, %v444
        %v487 = vunpack.c.l.s4 1934713408
        %v488 = vunpack.c.0.s8 %v487
        %v489 = vlaneseq
        %v490 = vshrl.u32 %v489, 7
        %v491 = vsub.s32 %v488, %v490
        %v492 = vrot.slane %v484, %v491
        %v494 = vunpack.c.l.s4 1934713408
        %v495 = vunpack.c.0.s8 %v494
        %v496 = vlaneseq
        %v497 = vshrl.u32 %v496, 7
        %v498 = vsub.s32 %v495, %v497
        %v499 = vrot.slane %v485, %v498
        %v500 = vcombine.low %v435, %v451
        %v501 = vcombine.high %v435, %v451
        %v503 = vunpack.c.l.s4 1934713408
        %v504 = vunpack.c.0.s8 %v503
        %v505 = vlaneseq
        %v506 = vshrl.u32 %v505, 7
        %v507 = vsub.s32 %v504, %v506
        %v508 = vrot.slane %v500, %v507
        %v510 = vunpack.c.l.s4 1934713408
        %v511 = vunpack.c.0.s8 %v510
        %v512 = vlaneseq
        %v513 = vshrl.u32 %v512, 7
        %v514 = vsub.s32 %v511, %v513
        %v515 = vrot.slane %v501, %v514
        %v516 = vcombine.low %v460, %v476
        %v517 = vcombine.high %v460, %v476
        %v519 = vunpack.c.l.s4 1934713408
        %v520 = vunpack.c.0.s8 %v519
        %v521 = vlaneseq
        %v522 = vshrl.u32 %v521, 7
        %v523 = vsub.s32 %v520, %v522
        %v524 = vrot.slane %v516, %v523
        %v526 = vunpack.c.l.s4 1934713408
        %v527 = vunpack.c.0.s8 %v526
        %v528 = vlaneseq
        %v529 = vshrl.u32 %v528, 7
        %v530 = vsub.s32 %v527, %v529
        %v531 = vrot.slane %v517, %v530
        %v532 = vcombine.low %v467, %v483
        %v533 = vcombine.high %v467, %v483
        %v535 = vunpack.c.l.s4 1934713408
        %v536 = vunpack.c.0.s8 %v535
        %v537 = vlaneseq
        %v538 = vshrl.u32 %v537, 7
        %v539 = vsub.s32 %v536, %v538
        %v540 = vrot.slane %v532, %v539
        %v542 = vunpack.c.l.s4 1934713408
        %v543 = vunpack.c.0.s8 %v542
        %v544 = vlaneseq
        %v545 = vshrl.u32 %v544, 7
        %v546 = vsub.s32 %v543, %v545
        %v547 = vrot.slane %v533, %v546
        %v548 = vcombine.low %v492, %v524
        %v549 = vcombine.high %v492, %v524
        %v550 = vcombine.low %v499, %v531
        %v551 = vcombine.high %v499, %v531
        %v552 = vcombine.low %v508, %v540
        %v553 = vcombine.high %v508, %v540
        %v554 = vcombine.low %v515, %v547
        %v555 = vcombine.high %v515, %v547
        %v556 = vcombine.low %v200, %v215
        %v557 = vcombine.high %v200, %v215
        %v559 = vunpack.c.l.s4 1983009808
        %v560 = vunpack.c.0.s8 %v559
        %v561 = vlaneseq
        %v562 = vshrl.u32 %v561, 7
        %v563 = vsub.s32 %v560, %v562
        %v564 = vrot.slane %v556, %v563
        %v566 = vunpack.c.l.s4 1983009808
        %v567 = vunpack.c.0.s8 %v566
        %v568 = vlaneseq
        %v569 = vshrl.u32 %v568, 7
        %v570 = vsub.s32 %v567, %v569
        %v571 = vrot.slane %v557, %v570
        %v572 = vcombine.low %v209, %v221
        %v573 = vcombine.high %v209, %v221
        %v575 = vunpack.c.l.s4 1983009808
        %v576 = vunpack.c.0.s8 %v575
        %v577 = vlaneseq
        %v578 = vshrl.u32 %v577, 7
        %v579 = vsub.s32 %v576, %v578
        %v580 = vrot.slane %v572, %v579
        %v582 = vunpack.c.l.s4 1983009808
        %v583 = vunpack.c.0.s8 %v582
        %v584 = vlaneseq
        %v585 = vshrl.u32 %v584, 7
        %v586 = vsub.s32 %v583, %v585
        %v587 = vrot.slane %v573, %v586
        %v588 = vcombine.low %v201, %v235
        %v589 = vcombine.high %v201, %v235
        %v591 = vunpack.c.l.s4 1983009808
        %v592 = vunpack.c.0.s8 %v591
        %v593 = vlaneseq
        %v594 = vshrl.u32 %v593, 7
        %v595 = vsub.s32 %v592, %v594
        %v596 = vrot.slane %v588, %v595
        %v598 = vunpack.c.l.s4 1983009808
        %v599 = vunpack.c.0.s8 %v598
        %v600 = vlaneseq
        %v601 = vshrl.u32 %v600, 7
        %v602 = vsub.s32 %v599, %v601
        %v603 = vrot.slane %v589, %v602
        %v604 = vcombine.low %v229, %v241
        %v605 = vcombine.high %v229, %v241
        %v607 = vunpack.c.l.s4 1983009808
        %v608 = vunpack.c.0.s8 %v607
        %v609 = vlaneseq
        %v610 = vshrl.u32 %v609, 7
        %v611 = vsub.s32 %v608, %v610
        %v612 = vrot.slane %v604, %v611
        %v614 = vunpack.c.l.s4 1983009808
        %v615 = vunpack.c.0.s8 %v614
        %v616 = vlaneseq
        %v617 = vshrl.u32 %v616, 7
        %v618 = vsub.s32 %v615, %v617
        %v619 = vrot.slane %v605, %v618
        %v620 = vcombine.low %v564, %v580
        %v621 = vcombine.high %v564, %v580
        %v623 = vunpack.c.l.s4 1934713408
        %v624 = vunpack.c.0.s8 %v623
        %v625 = vlaneseq
        %v626 = vshrl.u32 %v625, 7
        %v627 = vsub.s32 %v624, %v626
        %v628 = vrot.slane %v620, %v627
        %v630 = vunpack.c.l.s4 1934713408
        %v631 = vunpack.c.0.s8 %v630
        %v632 = vlaneseq
        %v633 = vshrl.u32 %v632, 7
        %v634 = vsub.s32 %v631, %v633
        %v635 = vrot.slane %v621, %v634
        %v636 = vcombine.low %v571, %v587
        %v637 = vcombine.high %v571, %v587
        %v639 = vunpack.c.l.s4 1934713408
        %v640 = vunpack.c.0.s8 %v639
        %v641 = vlaneseq
        %v642 = vshrl.u32 %v641, 7
        %v643 = vsub.s32 %v640, %v642
        %v644 = vrot.slane %v636, %v643
        %v646 = vunpack.c.l.s4 1934713408
        %v647 = vunpack.c.0.s8 %v646
        %v648 = vlaneseq
        %v649 = vshrl.u32 %v648, 7
        %v650 = vsub.s32 %v647, %v649
        %v651 = vrot.slane %v637, %v650
        %v652 = vcombine.low %v596, %v612
        %v653 = vcombine.high %v596, %v612
        %v655 = vunpack.c.l.s4 1934713408
        %v656 = vunpack.c.0.s8 %v655
        %v657 = vlaneseq
        %v658 = vshrl.u32 %v657, 7
        %v659 = vsub.s32 %v656, %v658
        %v660 = vrot.slane %v652, %v659
        %v662 = vunpack.c.l.s4 1934713408
        %v663 = vunpack.c.0.s8 %v662
        %v664 = vlaneseq
        %v665 = vshrl.u32 %v664, 7
        %v666 = vsub.s32 %v663, %v665
        %v667 = vrot.slane %v653, %v666
        %v668 = vcombine.low %v603, %v619
        %v669 = vcombine.high %v603, %v619
        %v671 = vunpack.c.l.s4 1934713408
        %v672 = vunpack.c.0.s8 %v671
        %v673 = vlaneseq
        %v674 = vshrl.u32 %v673, 7
        %v675 = vsub.s32 %v672, %v674
        %v676 = vrot.slane %v668, %v675
        %v678 = vunpack.c.l.s4 1934713408
        %v679 = vunpack.c.0.s8 %v678
        %v680 = vlaneseq
        %v681 = vshrl.u32 %v680, 7
        %v682 = vsub.s32 %v679, %v681
        %v683 = vrot.slane %v669, %v682
        %v684 = vcombine.low %v628, %v660
        %v685 = vcombine.high %v628, %v660
        %v686 = vcombine.low %v635, %v667
        %v687 = vcombine.high %v635, %v667
        %v688 = vcombine.low %v644, %v676
        %v689 = vcombine.high %v644, %v676
        %v690 = vcombine.low %v651, %v683
        %v691 = vcombine.high %v651, %v683
        %v692 = vcombine.low %v202, %v255
        %v693 = vcombine.high %v202, %v255
        %v695 = vunpack.c.l.s4 1983009808
        %v696 = vunpack.c.0.s8 %v695
        %v697 = vlaneseq
        %v698 = vshrl.u32 %v697, 7
        %v699 = vsub.s32 %v696, %v698
        %v700 = vrot.slane %v692, %v699
        %v702 = vunpack.c.l.s4 1983009808
        %v703 = vunpack.c.0.s8 %v702
        %v704 = vlaneseq
        %v705 = vshrl.u32 %v704, 7
        %v706 = vsub.s32 %v703, %v705
        %v707 = vrot.slane %v693, %v706
        %v708 = vcombine.low %v249, %v261
        %v709 = vcombine.high %v249, %v261
        %v711 = vunpack.c.l.s4 1983009808
        %v712 = vunpack.c.0.s8 %v711
        %v713 = vlaneseq
        %v714 = vshrl.u32 %v713, 7
        %v715 = vsub.s32 %v712, %v714
        %v716 = vrot.slane %v708, %v715
        %v718 = vunpack.c.l.s4 1983009808
        %v719 = vunpack.c.0.s8 %v718
        %v720 = vlaneseq
        %v721 = vshrl.u32 %v720, 7
        %v722 = vsub.s32 %v719, %v721
        %v723 = vrot.slane %v709, %v722
        %v724 = vcombine.low %v203, %v275
        %v725 = vcombine.high %v203, %v275
        %v727 = vunpack.c.l.s4 1983009808
        %v728 = vunpack.c.0.s8 %v727
        %v729 = vlaneseq
        %v730 = vshrl.u32 %v729, 7
        %v731 = vsub.s32 %v728, %v730
        %v732 = vrot.slane %v724, %v731
        %v734 = vunpack.c.l.s4 1983009808
        %v735 = vunpack.c.0.s8 %v734
        %v736 = vlaneseq
        %v737 = vshrl.u32 %v736, 7
        %v738 = vsub.s32 %v735, %v737
        %v739 = vrot.slane %v725, %v738
        %v740 = vcombine.low %v269, %v281
        %v741 = vcombine.high %v269, %v281
        %v743 = vunpack.c.l.s4 1983009808
        %v744 = vunpack.c.0.s8 %v743
        %v745 = vlaneseq
        %v746 = vshrl.u32 %v745, 7
        %v747 = vsub.s32 %v744, %v746
        %v748 = vrot.slane %v740, %v747
        %v750 = vunpack.c.l.s4 1983009808
        %v751 = vunpack.c.0.s8 %v750
        %v752 = vlaneseq
        %v753 = vshrl.u32 %v752, 7
        %v754 = vsub.s32 %v751, %v753
        %v755 = vrot.slane %v741, %v754
        %v756 = vcombine.low %v700, %v716
        %v757 = vcombine.high %v700, %v716
        %v759 = vunpack.c.l.s4 1934713408
        %v760 = vunpack.c.0.s8 %v759
        %v761 = vlaneseq
        %v762 = vshrl.u32 %v761, 7
        %v763 = vsub.s32 %v760, %v762
        %v764 = vrot.slane %v756, %v763
        %v766 = vunpack.c.l.s4 1934713408
        %v767 = vunpack.c.0.s8 %v766
        %v768 = vlaneseq
        %v769 = vshrl.u32 %v768, 7
        %v770 = vsub.s32 %v767, %v769
        %v771 = vrot.slane %v757, %v770
        %v772 = vcombine.low %v707, %v723
        %v773 = vcombine.high %v707, %v723
        %v775 = vunpack.c.l.s4 1934713408
        %v776 = vunpack.c.0.s8 %v775
        %v777 = vlaneseq
        %v778 = vshrl.u32 %v777, 7
        %v779 = vsub.s32 %v776, %v778
        %v780 = vrot.slane %v772, %v779
        %v782 = vunpack.c.l.s4 1934713408
        %v783 = vunpack.c.0.s8 %v782
        %v784 = vlaneseq
        %v785 = vshrl.u32 %v784, 7
        %v786 = vsub.s32 %v783, %v785
        %v787 = vrot.slane %v773, %v786
        %v788 = vcombine.low %v732, %v748
        %v789 = vcombine.high %v732, %v748
        %v791 = vunpack.c.l.s4 1934713408
        %v792 = vunpack.c.0.s8 %v791
        %v793 = vlaneseq
        %v794 = vshrl.u32 %v793, 7
        %v795 = vsub.s32 %v792, %v794
        %v796 = vrot.slane %v788, %v795
        %v798 = vunpack.c.l.s4 1934713408
        %v799 = vunpack.c.0.s8 %v798
        %v800 = vlaneseq
        %v801 = vshrl.u32 %v800, 7
        %v802 = vsub.s32 %v799, %v801
        %v803 = vrot.slane %v789, %v802
        %v804 = vcombine.low %v739, %v755
        %v805 = vcombine.high %v739, %v755
        %v807 = vunpack.c.l.s4 1934713408
        %v808 = vunpack.c.0.s8 %v807
        %v809 = vlaneseq
        %v810 = vshrl.u32 %v809, 7
        %v811 = vsub.s32 %v808, %v810
        %v812 = vrot.slane %v804, %v811
        %v814 = vunpack.c.l.s4 1934713408
        %v815 = vunpack.c.0.s8 %v814
        %v816 = vlaneseq
        %v817 = vshrl.u32 %v816, 7
        %v818 = vsub.s32 %v815, %v817
        %v819 = vrot.slane %v805, %v818
        %v820 = vcombine.low %v764, %v796
        %v821 = vcombine.high %v764, %v796
        %v822 = vcombine.low %v771, %v803
        %v823 = vcombine.high %v771, %v803
        %v824 = vcombine.low %v780, %v812
        %v825 = vcombine.high %v780, %v812
        %v826 = vcombine.low %v787, %v819
        %v827 = vcombine.high %v787, %v819
        %vm828 = vcmask 261120
        %v829 = vsel %vm828, %v412, 0.0
        %v830 = vsel %vm828, %v413, 0.0
        %v831 = vadd.f32 %v829, %v830
        %v832 = vsel %vm828, %v414, 0.0
        %v833 = vadd.f32 %v831, %v832
        %v834 = vsel %vm828, %v415, 0.0
        %v835 = vadd.f32 %v833, %v834
        %v836 = vsel %vm828, %v416, 0.0
        %v837 = vadd.f32 %v835, %v836
        %v838 = vsel %vm828, %v417, 0.0
        %v839 = vadd.f32 %v837, %v838
        %v840 = vsel %vm828, %v418, 0.0
        %v841 = vadd.f32 %v839, %v840
        %v842 = vsel %vm828, %v419, 0.0
        %v843 = vadd.f32 %v841, %v842
        %v844 = vsel %vm828, %v684, 0.0
        %v845 = vadd.f32 %v843, %v844
        %v846 = vsel %vm828, %v685, 0.0
        %v847 = vadd.f32 %v845, %v846
        %v848 = vsel %vm828, %v686, 0.0
        %v849 = vadd.f32 %v847, %v848
        %v850 = vsel %vm828, %v687, 0.0
        %v851 = vadd.f32 %v849, %v850
        %v852 = vsel %vm828, %v688, 0.0
        %v853 = vadd.f32 %v851, %v852
        %v854 = vsel %vm828, %v689, 0.0
        %v855 = vadd.f32 %v853, %v854
        %v856 = vsel %vm828, %v690, 0.0
        %v857 = vadd.f32 %v855, %v856
        %v858 = vsel %vm828, %v691, 0.0
        %v859 = vadd.f32 %v857, %v858
        %v860 = vsel %vm828, %v548, 0.0
        %v861 = vsel %vm828, %v549, 0.0
        %v862 = vadd.f32 %v860, %v861
        %v863 = vsel %vm828, %v550, 0.0
        %v864 = vadd.f32 %v862, %v863
        %v865 = vsel %vm828, %v551, 0.0
        %v866 = vadd.f32 %v864, %v865
        %v867 = vsel %vm828, %v552, 0.0
        %v868 = vadd.f32 %v866, %v867
        %v869 = vsel %vm828, %v553, 0.0
        %v870 = vadd.f32 %v868, %v869
        %v871 = vsel %vm828, %v554, 0.0
        %v872 = vadd.f32 %v870, %v871
        %v873 = vsel %vm828, %v555, 0.0
        %v874 = vadd.f32 %v872, %v873
        %v875 = vsel %vm828, %v820, 0.0
        %v876 = vadd.f32 %v874, %v875
        %v877 = vsel %vm828, %v821, 0.0
        %v878 = vadd.f32 %v876, %v877
        %v879 = vsel %vm828, %v822, 0.0
        %v880 = vadd.f32 %v878, %v879
        %v881 = vsel %vm828, %v823, 0.0
        %v882 = vadd.f32 %v880, %v881
        %v883 = vsel %vm828, %v824, 0.0
        %v884 = vadd.f32 %v882, %v883
        %v885 = vsel %vm828, %v825, 0.0
        %v886 = vadd.f32 %v884, %v885
        %v887 = vsel %vm828, %v826, 0.0
        %v888 = vadd.f32 %v886, %v887
        %v889 = vsel %vm828, %v827, 0.0
        %v890 = vadd.f32 %v888, %v889
        %v891 = vsel %vm828, %v412, -inf
        %v892 = vsel %vm828, %v413, -inf
        %v893 = vsel %vm828, %v414, -inf
        %v894 = vmax.f32 %v891, %v893
        %v895 = vsel %vm828, %v415, -inf
        %v896 = vmax.f32 %v892, %v895
        %v897 = vsel %vm828, %v416, -inf
        %v898 = vmax.f32 %v894, %v897
        %v899 = vsel %vm828, %v417, -inf
        %v900 = vmax.f32 %v896, %v899
        %v901 = vsel %vm828, %v418, -inf
        %v902 = vmax.f32 %v898, %v901
        %v903 = vsel %vm828, %v419, -inf
        %v904 = vmax.f32 %v900, %v903
        %v905 = vsel %vm828, %v684, -inf
        %v906 = vmax.f32 %v902, %v905
        %v907 = vsel %vm828, %v685, -inf
        %v908 = vmax.f32 %v904, %v907
        %v909 = vsel %vm828, %v686, -inf
        %v910 = vmax.f32 %v906, %v909
        %v911 = vsel %vm828, %v687, -inf
        %v912 = vmax.f32 %v908, %v911
        %v913 = vsel %vm828, %v688, -inf
        %v914 = vmax.f32 %v910, %v913
        %v915 = vsel %vm828, %v689, -inf
        %v916 = vmax.f32 %v912, %v915
        %v917 = vsel %vm828, %v690, -inf
        %v918 = vmax.f32 %v914, %v917
        %v919 = vsel %vm828, %v691, -inf
        %v920 = vmax.f32 %v916, %v919
        %v921 = vmax.f32 %v918, %v920
        %v922 = vsel %vm828, %v548, -inf
        %v923 = vsel %vm828, %v549, -inf
        %v924 = vsel %vm828, %v550, -inf
        %v925 = vmax.f32 %v922, %v924
        %v926 = vsel %vm828, %v551, -inf
        %v927 = vmax.f32 %v923, %v926
        %v928 = vsel %vm828, %v552, -inf
        %v929 = vmax.f32 %v925, %v928
        %v930 = vsel %vm828, %v553, -inf
        %v931 = vmax.f32 %v927, %v930
        %v932 = vsel %vm828, %v554, -inf
        %v933 = vmax.f32 %v929, %v932
        %v934 = vsel %vm828, %v555, -inf
        %v935 = vmax.f32 %v931, %v934
        %v936 = vsel %vm828, %v820, -inf
        %v937 = vmax.f32 %v933, %v936
        %v938 = vsel %vm828, %v821, -inf
        %v939 = vmax.f32 %v935, %v938
        %v940 = vsel %vm828, %v822, -inf
        %v941 = vmax.f32 %v937, %v940
        %v942 = vsel %vm828, %v823, -inf
        %v943 = vmax.f32 %v939, %v942
        %v944 = vsel %vm828, %v824, -inf
        %v945 = vmax.f32 %v941, %v944
        %v946 = vsel %vm828, %v825, -inf
        %v947 = vmax.f32 %v943, %v946
        %v948 = vsel %vm828, %v826, -inf
        %v949 = vmax.f32 %v945, %v948
        %v950 = vsel %vm828, %v827, -inf
        %v951 = vmax.f32 %v947, %v950
        %v952 = vmax.f32 %v949, %v951
        %v953 = vsel %vm828, %v859, 0.0
        %v954 = vsel %vm828, %v890, 0.0
        %v955 = vadd.f32 %v953, %v954
        %v956 = vrot.slane %v955, 4
        %v957 = vadd.f32 %v955, %v956
        %v958 = vrot.slane %v957, 2
        %v959 = vadd.f32 %v957, %v958
        %v960 = vrot.slane %v959, 1
        %v961 = vadd.f32 %v959, %v960
        %v962 = vmul.f32 %v961, 0.00390625
        %v963 = vsel %vm828, %v921, -inf
        %v964 = vsel %vm828, %v952, -inf
        %v965 = vmax.f32 %v963, %v964
        %v966 = vrot.slane %v965, 4
        %v967 = vmax.f32 %v965, %v966
        %v968 = vrot.slane %v967, 2
        %v969 = vmax.f32 %v967, %v968
        %v970 = vrot.slane %v969, 1
        %v971 = vmax.f32 %v969, %v970
        %v972 = vadd.f32 %v962, %v971
        %v973 = vld [vmem:[%s1] sm:$0x3]
        %v974 = vmul.f32 %v973, %v972
        %vm975 = vcmask 254976
        %v976 = vsel %vm975, %v974, 0.0
        %977 = vadd.xlane.f32.xlu0 %v976
        %v978 = vpop.xlane.xlu0 %977
        %v979 = vmax.f32 %v978, 0.0
        %v980 = vld [vmem:[%s2] sm:$0x3]
        %v981 = vmul.f32 %v980, %v979
        %v982 = vsel %vm975, %v981, 0.0
        %v983 = vrot.slane %v982, 4
        %v984 = vadd.f32 %v982, %v983
        %v985 = vrot.slane %v984, 2
        %v986 = vadd.f32 %v984, %v985
        %v987 = vrot.slane %v986, 1
        %v988 = vadd.f32 %v986, %v987
        %v989 = vxor.u32 %v988, 2147483648
        %v990 = vmul.f32 %v989, 1.442695
        %v991 = vpow.pop %v990
        %v992 = vadd.f32 %v991, 1.0
        %v993 = vrcp.pop %v992
        %v994 = vmul.f32 1.0, %v993
        %v995 = vmul.f32 %v412, %v994
        %v996 = vmul.f32 %v548, %v994
        %v997 = vmul.f32 %v413, %v994
        %v998 = vmul.f32 %v549, %v994
        %v999 = vmul.f32 %v414, %v994
        %v1000 = vmul.f32 %v550, %v994
        %v1001 = vmul.f32 %v415, %v994
        %v1002 = vmul.f32 %v551, %v994
        %v1003 = vmul.f32 %v416, %v994
        %v1004 = vmul.f32 %v552, %v994
        %v1005 = vmul.f32 %v417, %v994
        %v1006 = vmul.f32 %v553, %v994
        %v1007 = vmul.f32 %v418, %v994
        %v1008 = vmul.f32 %v554, %v994
        %v1009 = vmul.f32 %v419, %v994
        %v1010 = vmul.f32 %v555, %v994
        %v1011 = vmul.f32 %v684, %v994
        %v1012 = vmul.f32 %v820, %v994
        %v1013 = vmul.f32 %v685, %v994
        %v1014 = vmul.f32 %v821, %v994
        %v1015 = vmul.f32 %v686, %v994
        %v1016 = vmul.f32 %v822, %v994
        %v1017 = vmul.f32 %v687, %v994
        %v1018 = vmul.f32 %v823, %v994
        %v1019 = vmul.f32 %v688, %v994
        %v1020 = vmul.f32 %v824, %v994
        %v1021 = vmul.f32 %v689, %v994
        %v1022 = vmul.f32 %v825, %v994
        %v1023 = vmul.f32 %v690, %v994
        %v1024 = vmul.f32 %v826, %v994
        %v1025 = vmul.f32 %v691, %v994
        %v1026 = vmul.f32 %v827, %v994
        %v1027 = vsel %vm828, %v995, 0.0
        %1028 = vadd.xlane.f32.xlu0 %v1027
        %v1029 = vpop.xlane.xlu0 %1028
        %v1030 = vsel %vm828, %v996, 0.0
        %1031 = vadd.xlane.f32.xlu0 %v1030
        %v1032 = vpop.xlane.xlu0 %1031
        %v1033 = vsel %vm828, %v997, 0.0
        %1034 = vadd.xlane.f32.xlu0 %v1033
        %v1035 = vpop.xlane.xlu0 %1034
        %v1036 = vsel %vm828, %v998, 0.0
        %1037 = vadd.xlane.f32.xlu0 %v1036
        %v1038 = vpop.xlane.xlu0 %1037
        %v1039 = vsel %vm828, %v999, 0.0
        %1040 = vadd.xlane.f32.xlu0 %v1039
        %v1041 = vpop.xlane.xlu0 %1040
        %v1042 = vsel %vm828, %v1000, 0.0
        %1043 = vadd.xlane.f32.xlu0 %v1042
        %v1044 = vpop.xlane.xlu0 %1043
        %v1045 = vsel %vm828, %v1001, 0.0
        %1046 = vadd.xlane.f32.xlu0 %v1045
        %v1047 = vpop.xlane.xlu0 %1046
        %v1048 = vsel %vm828, %v1002, 0.0
        %1049 = vadd.xlane.f32.xlu0 %v1048
        %v1050 = vpop.xlane.xlu0 %1049
        %v1051 = vsel %vm828, %v1003, 0.0
        %1052 = vadd.xlane.f32.xlu0 %v1051
        %v1053 = vpop.xlane.xlu0 %1052
        %v1054 = vsel %vm828, %v1004, 0.0
        %1055 = vadd.xlane.f32.xlu0 %v1054
        %v1056 = vpop.xlane.xlu0 %1055
        %v1057 = vsel %vm828, %v1005, 0.0
        %1058 = vadd.xlane.f32.xlu0 %v1057
        %v1059 = vpop.xlane.xlu0 %1058
        %v1060 = vsel %vm828, %v1006, 0.0
        %1061 = vadd.xlane.f32.xlu0 %v1060
        %v1062 = vpop.xlane.xlu0 %1061
        %v1063 = vsel %vm828, %v1007, 0.0
        %1064 = vadd.xlane.f32.xlu0 %v1063
        %v1065 = vpop.xlane.xlu0 %1064
        %v1066 = vsel %vm828, %v1008, 0.0
        %1067 = vadd.xlane.f32.xlu0 %v1066
        %v1068 = vpop.xlane.xlu0 %1067
        %v1069 = vsel %vm828, %v1009, 0.0
        %1070 = vadd.xlane.f32.xlu0 %v1069
        %v1071 = vpop.xlane.xlu0 %1070
        %v1072 = vsel %vm828, %v1010, 0.0
        %1073 = vadd.xlane.f32.xlu0 %v1072
        %v1074 = vpop.xlane.xlu0 %1073
        %v1075 = vsel %vm828, %v1011, 0.0
        %1076 = vadd.xlane.f32.xlu0 %v1075
        %v1077 = vpop.xlane.xlu0 %1076
        %v1078 = vsel %vm828, %v1012, 0.0
        %1079 = vadd.xlane.f32.xlu0 %v1078
        %v1080 = vpop.xlane.xlu0 %1079
        %v1081 = vsel %vm828, %v1013, 0.0
        %1082 = vadd.xlane.f32.xlu0 %v1081
        %v1083 = vpop.xlane.xlu0 %1082
        %v1084 = vsel %vm828, %v1014, 0.0
        %1085 = vadd.xlane.f32.xlu0 %v1084
        %v1086 = vpop.xlane.xlu0 %1085
        %v1087 = vsel %vm828, %v1015, 0.0
        %1088 = vadd.xlane.f32.xlu0 %v1087
        %v1089 = vpop.xlane.xlu0 %1088
        %v1090 = vsel %vm828, %v1016, 0.0
        %1091 = vadd.xlane.f32.xlu0 %v1090
        %v1092 = vpop.xlane.xlu0 %1091
        %v1093 = vsel %vm828, %v1017, 0.0
        %1094 = vadd.xlane.f32.xlu0 %v1093
        %v1095 = vpop.xlane.xlu0 %1094
        %v1096 = vsel %vm828, %v1018, 0.0
        %1097 = vadd.xlane.f32.xlu0 %v1096
        %v1098 = vpop.xlane.xlu0 %1097
        %v1099 = vsel %vm828, %v1019, 0.0
        %1100 = vadd.xlane.f32.xlu0 %v1099
        %v1101 = vpop.xlane.xlu0 %1100
        %v1102 = vsel %vm828, %v1020, 0.0
        %1103 = vadd.xlane.f32.xlu0 %v1102
        %v1104 = vpop.xlane.xlu0 %1103
        %v1105 = vsel %vm828, %v1021, 0.0
        %1106 = vadd.xlane.f32.xlu0 %v1105
        %v1107 = vpop.xlane.xlu0 %1106
        %v1108 = vsel %vm828, %v1022, 0.0
        %1109 = vadd.xlane.f32.xlu0 %v1108
        %v1110 = vpop.xlane.xlu0 %1109
        %v1111 = vsel %vm828, %v1023, 0.0
        %1112 = vadd.xlane.f32.xlu0 %v1111
        %v1113 = vpop.xlane.xlu0 %1112
        %v1114 = vsel %vm828, %v1024, 0.0
        %1115 = vadd.xlane.f32.xlu0 %v1114
        %v1116 = vpop.xlane.xlu0 %1115
        %v1117 = vsel %vm828, %v1025, 0.0
        %1118 = vadd.xlane.f32.xlu0 %v1117
        %v1119 = vpop.xlane.xlu0 %1118
        %v1120 = vsel %vm828, %v1026, 0.0
        %1121 = vadd.xlane.f32.xlu0 %v1120
        %v1122 = vpop.xlane.xlu0 %1121
        %v1123 = vmul.f32 %v1029, 0.03125
        %v1124 = vmul.f32 %v1032, 0.03125
        %v1125 = vmul.f32 %v1035, 0.03125
        %v1126 = vmul.f32 %v1038, 0.03125
        %v1127 = vmul.f32 %v1041, 0.03125
        %v1128 = vmul.f32 %v1044, 0.03125
        %v1129 = vmul.f32 %v1047, 0.03125
        %v1130 = vmul.f32 %v1050, 0.03125
        %v1131 = vmul.f32 %v1053, 0.03125
        %v1132 = vmul.f32 %v1056, 0.03125
        %v1133 = vmul.f32 %v1059, 0.03125
        %v1134 = vmul.f32 %v1062, 0.03125
        %v1135 = vmul.f32 %v1065, 0.03125
        %v1136 = vmul.f32 %v1068, 0.03125
        %v1137 = vmul.f32 %v1071, 0.03125
        %v1138 = vmul.f32 %v1074, 0.03125
        %v1139 = vmul.f32 %v1077, 0.03125
        %v1140 = vmul.f32 %v1080, 0.03125
        %v1141 = vmul.f32 %v1083, 0.03125
        %v1142 = vmul.f32 %v1086, 0.03125
        %v1143 = vmul.f32 %v1089, 0.03125
        %v1144 = vmul.f32 %v1092, 0.03125
        %v1145 = vmul.f32 %v1095, 0.03125
        %v1146 = vmul.f32 %v1098, 0.03125
        %v1147 = vmul.f32 %v1101, 0.03125
        %v1148 = vmul.f32 %v1104, 0.03125
        %v1149 = vmul.f32 %v1107, 0.03125
        %v1150 = vmul.f32 %v1110, 0.03125
        %v1151 = vmul.f32 %v1113, 0.03125
        %v1152 = vmul.f32 %v1116, 0.03125
        %v1153 = vmul.f32 %v1119, 0.03125
        %v1154 = vmul.f32 %v1122, 0.03125
        %v1155 = vsel %vm828, %v995, -inf
        %1156 = vmax.xlane.f32.xlu0 %v1155
        %v1157 = vpop.xlane.xlu0 %1156
        %v1158 = vsel %vm828, %v996, -inf
        %1159 = vmax.xlane.f32.xlu0 %v1158
        %v1160 = vpop.xlane.xlu0 %1159
        %v1161 = vsel %vm828, %v997, -inf
        %1162 = vmax.xlane.f32.xlu0 %v1161
        %v1163 = vpop.xlane.xlu0 %1162
        %v1164 = vsel %vm828, %v998, -inf
        %1165 = vmax.xlane.f32.xlu0 %v1164
        %v1166 = vpop.xlane.xlu0 %1165
        %v1167 = vsel %vm828, %v999, -inf
        %1168 = vmax.xlane.f32.xlu0 %v1167
        %v1169 = vpop.xlane.xlu0 %1168
        %v1170 = vsel %vm828, %v1000, -inf
        %1171 = vmax.xlane.f32.xlu0 %v1170
        %v1172 = vpop.xlane.xlu0 %1171
        %v1173 = vsel %vm828, %v1001, -inf
        %1174 = vmax.xlane.f32.xlu0 %v1173
        %v1175 = vpop.xlane.xlu0 %1174
        %v1176 = vsel %vm828, %v1002, -inf
        %1177 = vmax.xlane.f32.xlu0 %v1176
        %v1178 = vpop.xlane.xlu0 %1177
        %v1179 = vsel %vm828, %v1003, -inf
        %1180 = vmax.xlane.f32.xlu0 %v1179
        %v1181 = vpop.xlane.xlu0 %1180
        %v1182 = vsel %vm828, %v1004, -inf
        %1183 = vmax.xlane.f32.xlu0 %v1182
        %v1184 = vpop.xlane.xlu0 %1183
        %v1185 = vsel %vm828, %v1005, -inf
        %1186 = vmax.xlane.f32.xlu0 %v1185
        %v1187 = vpop.xlane.xlu0 %1186
        %v1188 = vsel %vm828, %v1006, -inf
        %1189 = vmax.xlane.f32.xlu0 %v1188
        %v1190 = vpop.xlane.xlu0 %1189
        %v1191 = vsel %vm828, %v1007, -inf
        %1192 = vmax.xlane.f32.xlu0 %v1191
        %v1193 = vpop.xlane.xlu0 %1192
        %v1194 = vsel %vm828, %v1008, -inf
        %1195 = vmax.xlane.f32.xlu0 %v1194
        %v1196 = vpop.xlane.xlu0 %1195
        %v1197 = vsel %vm828, %v1009, -inf
        %1198 = vmax.xlane.f32.xlu0 %v1197
        %v1199 = vpop.xlane.xlu0 %1198
        %v1200 = vsel %vm828, %v1010, -inf
        %1201 = vmax.xlane.f32.xlu0 %v1200
        %v1202 = vpop.xlane.xlu0 %1201
        %v1203 = vsel %vm828, %v1011, -inf
        %1204 = vmax.xlane.f32.xlu0 %v1203
        %v1205 = vpop.xlane.xlu0 %1204
        %v1206 = vsel %vm828, %v1012, -inf
        %1207 = vmax.xlane.f32.xlu0 %v1206
        %v1208 = vpop.xlane.xlu0 %1207
        %v1209 = vsel %vm828, %v1013, -inf
        %1210 = vmax.xlane.f32.xlu0 %v1209
        %v1211 = vpop.xlane.xlu0 %1210
        %v1212 = vsel %vm828, %v1014, -inf
        %1213 = vmax.xlane.f32.xlu0 %v1212
        %v1214 = vpop.xlane.xlu0 %1213
        %v1215 = vsel %vm828, %v1015, -inf
        %1216 = vmax.xlane.f32.xlu0 %v1215
        %v1217 = vpop.xlane.xlu0 %1216
        %v1218 = vsel %vm828, %v1016, -inf
        %1219 = vmax.xlane.f32.xlu0 %v1218
        %v1220 = vpop.xlane.xlu0 %1219
        %v1221 = vsel %vm828, %v1017, -inf
        %1222 = vmax.xlane.f32.xlu0 %v1221
        %v1223 = vpop.xlane.xlu0 %1222
        %v1224 = vsel %vm828, %v1018, -inf
        %1225 = vmax.xlane.f32.xlu0 %v1224
        %v1226 = vpop.xlane.xlu0 %1225
        %v1227 = vsel %vm828, %v1019, -inf
        %1228 = vmax.xlane.f32.xlu0 %v1227
        %v1229 = vpop.xlane.xlu0 %1228
        %v1230 = vsel %vm828, %v1020, -inf
        %1231 = vmax.xlane.f32.xlu0 %v1230
        %v1232 = vpop.xlane.xlu0 %1231
        %v1233 = vsel %vm828, %v1021, -inf
        %1234 = vmax.xlane.f32.xlu0 %v1233
        %v1235 = vpop.xlane.xlu0 %1234
        %v1236 = vsel %vm828, %v1022, -inf
        %1237 = vmax.xlane.f32.xlu0 %v1236
        %v1238 = vpop.xlane.xlu0 %1237
        %v1239 = vsel %vm828, %v1023, -inf
        %1240 = vmax.xlane.f32.xlu0 %v1239
        %v1241 = vpop.xlane.xlu0 %1240
        %v1242 = vsel %vm828, %v1024, -inf
        %1243 = vmax.xlane.f32.xlu0 %v1242
        %v1244 = vpop.xlane.xlu0 %1243
        %v1245 = vsel %vm828, %v1025, -inf
        %1246 = vmax.xlane.f32.xlu0 %v1245
        %v1247 = vpop.xlane.xlu0 %1246
        %v1248 = vsel %vm828, %v1026, -inf
        %1249 = vmax.xlane.f32.xlu0 %v1248
        %v1250 = vpop.xlane.xlu0 %1249
        %v1283 = vlaneseq
        %v1284 = vand.u32 %v1283, 127
        %v1285 = vlaneseq
        %v1286 = vshrl.u32 %v1285, 7
        %v1287 = vsub.s32 %v1284, %v1286
        %v1288 = vrot.slane %v1123, %v1287
        %v1289 = vadd.s32 %v1284, 4294967288
        %v1290 = vlaneseq
        %v1291 = vshrl.u32 %v1290, 7
        %v1292 = vsub.s32 %v1289, %v1291
        %v1293 = vrot.slane %v1124, %v1292
        %vm1294 = vcmask 130112
        %v1295 = vsel %vm1294, %v1293, %v1288
        %v1296 = vlaneseq
        %v1297 = vshrl.u32 %v1296, 7
        %v1298 = vsub.s32 %v1284, %v1297
        %v1299 = vrot.slane %v1125, %v1298
        %v1300 = vlaneseq
        %v1301 = vshrl.u32 %v1300, 7
        %v1302 = vsub.s32 %v1289, %v1301
        %v1303 = vrot.slane %v1126, %v1302
        %v1304 = vsel %vm1294, %v1303, %v1299
        %v1305 = vlaneseq
        %v1306 = vshrl.u32 %v1305, 7
        %v1307 = vsub.s32 %v1284, %v1306
        %v1308 = vrot.slane %v1127, %v1307
        %v1309 = vlaneseq
        %v1310 = vshrl.u32 %v1309, 7
        %v1311 = vsub.s32 %v1289, %v1310
        %v1312 = vrot.slane %v1128, %v1311
        %v1313 = vsel %vm1294, %v1312, %v1308
        %v1314 = vlaneseq
        %v1315 = vshrl.u32 %v1314, 7
        %v1316 = vsub.s32 %v1284, %v1315
        %v1317 = vrot.slane %v1129, %v1316
        %v1318 = vlaneseq
        %v1319 = vshrl.u32 %v1318, 7
        %v1320 = vsub.s32 %v1289, %v1319
        %v1321 = vrot.slane %v1130, %v1320
        %v1322 = vsel %vm1294, %v1321, %v1317
        %v1323 = vlaneseq
        %v1324 = vshrl.u32 %v1323, 7
        %v1325 = vsub.s32 %v1284, %v1324
        %v1326 = vrot.slane %v1131, %v1325
        %v1327 = vlaneseq
        %v1328 = vshrl.u32 %v1327, 7
        %v1329 = vsub.s32 %v1289, %v1328
        %v1330 = vrot.slane %v1132, %v1329
        %v1331 = vsel %vm1294, %v1330, %v1326
        %v1332 = vlaneseq
        %v1333 = vshrl.u32 %v1332, 7
        %v1334 = vsub.s32 %v1284, %v1333
        %v1335 = vrot.slane %v1133, %v1334
        %v1336 = vlaneseq
        %v1337 = vshrl.u32 %v1336, 7
        %v1338 = vsub.s32 %v1289, %v1337
        %v1339 = vrot.slane %v1134, %v1338
        %v1340 = vsel %vm1294, %v1339, %v1335
        %v1341 = vlaneseq
        %v1342 = vshrl.u32 %v1341, 7
        %v1343 = vsub.s32 %v1284, %v1342
        %v1344 = vrot.slane %v1135, %v1343
        %v1345 = vlaneseq
        %v1346 = vshrl.u32 %v1345, 7
        %v1347 = vsub.s32 %v1289, %v1346
        %v1348 = vrot.slane %v1136, %v1347
        %v1349 = vsel %vm1294, %v1348, %v1344
        %v1350 = vlaneseq
        %v1351 = vshrl.u32 %v1350, 7
        %v1352 = vsub.s32 %v1284, %v1351
        %v1353 = vrot.slane %v1137, %v1352
        %v1354 = vlaneseq
        %v1355 = vshrl.u32 %v1354, 7
        %v1356 = vsub.s32 %v1289, %v1355
        %v1357 = vrot.slane %v1138, %v1356
        %v1358 = vsel %vm1294, %v1357, %v1353
        %v1359 = vlaneseq
        %v1360 = vshrl.u32 %v1359, 7
        %v1361 = vsub.s32 %v1284, %v1360
        %v1362 = vrot.slane %v1139, %v1361
        %v1363 = vlaneseq
        %v1364 = vshrl.u32 %v1363, 7
        %v1365 = vsub.s32 %v1289, %v1364
        %v1366 = vrot.slane %v1140, %v1365
        %v1367 = vsel %vm1294, %v1366, %v1362
        %v1368 = vlaneseq
        %v1369 = vshrl.u32 %v1368, 7
        %v1370 = vsub.s32 %v1284, %v1369
        %v1371 = vrot.slane %v1141, %v1370
        %v1372 = vlaneseq
        %v1373 = vshrl.u32 %v1372, 7
        %v1374 = vsub.s32 %v1289, %v1373
        %v1375 = vrot.slane %v1142, %v1374
        %v1376 = vsel %vm1294, %v1375, %v1371
        %v1377 = vlaneseq
        %v1378 = vshrl.u32 %v1377, 7
        %v1379 = vsub.s32 %v1284, %v1378
        %v1380 = vrot.slane %v1143, %v1379
        %v1381 = vlaneseq
        %v1382 = vshrl.u32 %v1381, 7
        %v1383 = vsub.s32 %v1289, %v1382
        %v1384 = vrot.slane %v1144, %v1383
        %v1385 = vsel %vm1294, %v1384, %v1380
        %v1386 = vlaneseq
        %v1387 = vshrl.u32 %v1386, 7
        %v1388 = vsub.s32 %v1284, %v1387
        %v1389 = vrot.slane %v1145, %v1388
        %v1390 = vlaneseq
        %v1391 = vshrl.u32 %v1390, 7
        %v1392 = vsub.s32 %v1289, %v1391
        %v1393 = vrot.slane %v1146, %v1392
        %v1394 = vsel %vm1294, %v1393, %v1389
        %v1395 = vlaneseq
        %v1396 = vshrl.u32 %v1395, 7
        %v1397 = vsub.s32 %v1284, %v1396
        %v1398 = vrot.slane %v1147, %v1397
        %v1399 = vlaneseq
        %v1400 = vshrl.u32 %v1399, 7
        %v1401 = vsub.s32 %v1289, %v1400
        %v1402 = vrot.slane %v1148, %v1401
        %v1403 = vsel %vm1294, %v1402, %v1398
        %v1404 = vlaneseq
        %v1405 = vshrl.u32 %v1404, 7
        %v1406 = vsub.s32 %v1284, %v1405
        %v1407 = vrot.slane %v1149, %v1406
        %v1408 = vlaneseq
        %v1409 = vshrl.u32 %v1408, 7
        %v1410 = vsub.s32 %v1289, %v1409
        %v1411 = vrot.slane %v1150, %v1410
        %v1412 = vsel %vm1294, %v1411, %v1407
        %v1413 = vlaneseq
        %v1414 = vshrl.u32 %v1413, 7
        %v1415 = vsub.s32 %v1284, %v1414
        %v1416 = vrot.slane %v1151, %v1415
        %v1417 = vlaneseq
        %v1418 = vshrl.u32 %v1417, 7
        %v1419 = vsub.s32 %v1289, %v1418
        %v1420 = vrot.slane %v1152, %v1419
        %v1421 = vsel %vm1294, %v1420, %v1416
        %v1422 = vlaneseq
        %v1423 = vshrl.u32 %v1422, 7
        %v1424 = vsub.s32 %v1284, %v1423
        %v1425 = vrot.slane %v1153, %v1424
        %v1426 = vlaneseq
        %v1427 = vshrl.u32 %v1426, 7
        %v1428 = vsub.s32 %v1289, %v1427
        %v1429 = vrot.slane %v1154, %v1428
        %v1430 = vsel %vm1294, %v1429, %v1425
        %vm1431 = vcmask 1044484
        %v1432 = vsel %vm1431, %v1304, %v1295
        %vm1433 = vcmask 1045509
        %v1434 = vsel %vm1433, %v1313, %v1432
        %vm1435 = vcmask 1046534
        %v1436 = vsel %vm1435, %v1322, %v1434
        %vm1437 = vcmask 1047559
        %v1438 = vsel %vm1437, %v1331, %v1436
        %vm1439 = vcmask 1041409
        %v1440 = vsel %vm1439, %v1349, %v1340
        %vm1441 = vcmask 1042434
        %v1442 = vsel %vm1441, %v1358, %v1440
        %vm1443 = vcmask 1043459
        %v1444 = vsel %vm1443, %v1367, %v1442
        %v1445 = vsel %vm1431, %v1376, %v1444
        %v1446 = vsel %vm1433, %v1385, %v1445
        %v1447 = vsel %vm1435, %v1394, %v1446
        %v1448 = vsel %vm1437, %v1403, %v1447
        %v1449 = vsel %vm1439, %v1421, %v1412
        %v1450 = vsel %vm1441, %v1430, %v1449
        %vm1454 = vcmask 1042432
        %v1455 = vsel %vm1454, 0.0, %v1438
        %v1456 = vsel %vm1454, %v1450, 0.0
        %v1489 = vlaneseq
        %v1490 = vshrl.u32 %v1489, 7
        %v1491 = vsub.s32 %v1284, %v1490
        %v1492 = vrot.slane %v1157, %v1491
        %v1493 = vlaneseq
        %v1494 = vshrl.u32 %v1493, 7
        %v1495 = vsub.s32 %v1289, %v1494
        %v1496 = vrot.slane %v1160, %v1495
        %v1497 = vsel %vm1294, %v1496, %v1492
        %v1498 = vlaneseq
        %v1499 = vshrl.u32 %v1498, 7
        %v1500 = vsub.s32 %v1284, %v1499
        %v1501 = vrot.slane %v1163, %v1500
        %v1502 = vlaneseq
        %v1503 = vshrl.u32 %v1502, 7
        %v1504 = vsub.s32 %v1289, %v1503
        %v1505 = vrot.slane %v1166, %v1504
        %v1506 = vsel %vm1294, %v1505, %v1501
        %v1507 = vlaneseq
        %v1508 = vshrl.u32 %v1507, 7
        %v1509 = vsub.s32 %v1284, %v1508
        %v1510 = vrot.slane %v1169, %v1509
        %v1511 = vlaneseq
        %v1512 = vshrl.u32 %v1511, 7
        %v1513 = vsub.s32 %v1289, %v1512
        %v1514 = vrot.slane %v1172, %v1513
        %v1515 = vsel %vm1294, %v1514, %v1510
        %v1516 = vlaneseq
        %v1517 = vshrl.u32 %v1516, 7
        %v1518 = vsub.s32 %v1284, %v1517
        %v1519 = vrot.slane %v1175, %v1518
        %v1520 = vlaneseq
        %v1521 = vshrl.u32 %v1520, 7
        %v1522 = vsub.s32 %v1289, %v1521
        %v1523 = vrot.slane %v1178, %v1522
        %v1524 = vsel %vm1294, %v1523, %v1519
        %v1525 = vlaneseq
        %v1526 = vshrl.u32 %v1525, 7
        %v1527 = vsub.s32 %v1284, %v1526
        %v1528 = vrot.slane %v1181, %v1527
        %v1529 = vlaneseq
        %v1530 = vshrl.u32 %v1529, 7
        %v1531 = vsub.s32 %v1289, %v1530
        %v1532 = vrot.slane %v1184, %v1531
        %v1533 = vsel %vm1294, %v1532, %v1528
        %v1534 = vlaneseq
        %v1535 = vshrl.u32 %v1534, 7
        %v1536 = vsub.s32 %v1284, %v1535
        %v1537 = vrot.slane %v1187, %v1536
        %v1538 = vlaneseq
        %v1539 = vshrl.u32 %v1538, 7
        %v1540 = vsub.s32 %v1289, %v1539
        %v1541 = vrot.slane %v1190, %v1540
        %v1542 = vsel %vm1294, %v1541, %v1537
        %v1543 = vlaneseq
        %v1544 = vshrl.u32 %v1543, 7
        %v1545 = vsub.s32 %v1284, %v1544
        %v1546 = vrot.slane %v1193, %v1545
        %v1547 = vlaneseq
        %v1548 = vshrl.u32 %v1547, 7
        %v1549 = vsub.s32 %v1289, %v1548
        %v1550 = vrot.slane %v1196, %v1549
        %v1551 = vsel %vm1294, %v1550, %v1546
        %v1552 = vlaneseq
        %v1553 = vshrl.u32 %v1552, 7
        %v1554 = vsub.s32 %v1284, %v1553
        %v1555 = vrot.slane %v1199, %v1554
        %v1556 = vlaneseq
        %v1557 = vshrl.u32 %v1556, 7
        %v1558 = vsub.s32 %v1289, %v1557
        %v1559 = vrot.slane %v1202, %v1558
        %v1560 = vsel %vm1294, %v1559, %v1555
        %v1561 = vlaneseq
        %v1562 = vshrl.u32 %v1561, 7
        %v1563 = vsub.s32 %v1284, %v1562
        %v1564 = vrot.slane %v1205, %v1563
        %v1565 = vlaneseq
        %v1566 = vshrl.u32 %v1565, 7
        %v1567 = vsub.s32 %v1289, %v1566
        %v1568 = vrot.slane %v1208, %v1567
        %v1569 = vsel %vm1294, %v1568, %v1564
        %v1570 = vlaneseq
        %v1571 = vshrl.u32 %v1570, 7
        %v1572 = vsub.s32 %v1284, %v1571
        %v1573 = vrot.slane %v1211, %v1572
        %v1574 = vlaneseq
        %v1575 = vshrl.u32 %v1574, 7
        %v1576 = vsub.s32 %v1289, %v1575
        %v1577 = vrot.slane %v1214, %v1576
        %v1578 = vsel %vm1294, %v1577, %v1573
        %v1579 = vlaneseq
        %v1580 = vshrl.u32 %v1579, 7
        %v1581 = vsub.s32 %v1284, %v1580
        %v1582 = vrot.slane %v1217, %v1581
        %v1583 = vlaneseq
        %v1584 = vshrl.u32 %v1583, 7
        %v1585 = vsub.s32 %v1289, %v1584
        %v1586 = vrot.slane %v1220, %v1585
        %v1587 = vsel %vm1294, %v1586, %v1582
        %v1588 = vlaneseq
        %v1589 = vshrl.u32 %v1588, 7
        %v1590 = vsub.s32 %v1284, %v1589
        %v1591 = vrot.slane %v1223, %v1590
        %v1592 = vlaneseq
        %v1593 = vshrl.u32 %v1592, 7
        %v1594 = vsub.s32 %v1289, %v1593
        %v1595 = vrot.slane %v1226, %v1594
        %v1596 = vsel %vm1294, %v1595, %v1591
        %v1597 = vlaneseq
        %v1598 = vshrl.u32 %v1597, 7
        %v1599 = vsub.s32 %v1284, %v1598
        %v1600 = vrot.slane %v1229, %v1599
        %v1601 = vlaneseq
        %v1602 = vshrl.u32 %v1601, 7
        %v1603 = vsub.s32 %v1289, %v1602
        %v1604 = vrot.slane %v1232, %v1603
        %v1605 = vsel %vm1294, %v1604, %v1600
        %v1606 = vlaneseq
        %v1607 = vshrl.u32 %v1606, 7
        %v1608 = vsub.s32 %v1284, %v1607
        %v1609 = vrot.slane %v1235, %v1608
        %v1610 = vlaneseq
        %v1611 = vshrl.u32 %v1610, 7
        %v1612 = vsub.s32 %v1289, %v1611
        %v1613 = vrot.slane %v1238, %v1612
        %v1614 = vsel %vm1294, %v1613, %v1609
        %v1615 = vlaneseq
        %v1616 = vshrl.u32 %v1615, 7
        %v1617 = vsub.s32 %v1284, %v1616
        %v1618 = vrot.slane %v1241, %v1617
        %v1619 = vlaneseq
        %v1620 = vshrl.u32 %v1619, 7
        %v1621 = vsub.s32 %v1289, %v1620
        %v1622 = vrot.slane %v1244, %v1621
        %v1623 = vsel %vm1294, %v1622, %v1618
        %v1624 = vlaneseq
        %v1625 = vshrl.u32 %v1624, 7
        %v1626 = vsub.s32 %v1284, %v1625
        %v1627 = vrot.slane %v1247, %v1626
        %v1628 = vlaneseq
        %v1629 = vshrl.u32 %v1628, 7
        %v1630 = vsub.s32 %v1289, %v1629
        %v1631 = vrot.slane %v1250, %v1630
        %v1632 = vsel %vm1294, %v1631, %v1627
        %v1633 = vsel %vm1431, %v1506, %v1497
        %v1634 = vsel %vm1433, %v1515, %v1633
        %v1635 = vsel %vm1435, %v1524, %v1634
        %v1636 = vsel %vm1437, %v1533, %v1635
        %v1637 = vsel %vm1439, %v1551, %v1542
        %v1638 = vsel %vm1441, %v1560, %v1637
        %v1639 = vsel %vm1443, %v1569, %v1638
        %v1640 = vsel %vm1431, %v1578, %v1639
        %v1641 = vsel %vm1433, %v1587, %v1640
        %v1642 = vsel %vm1435, %v1596, %v1641
        %v1643 = vsel %vm1437, %v1605, %v1642
        %v1644 = vsel %vm1439, %v1623, %v1614
        %v1645 = vsel %vm1441, %v1632, %v1644
        %v1648 = vsel %vm1454, 0.0, %v1636
        %v1649 = vsel %vm1454, %v1645, 0.0
        %vm1652 = vcmask 1046528
        %v1653 = vrot.slane %v1455, 1
        %v1654 = vrot.slane %v1448, 1
        %v1655 = vsel %vm1652, %v1653, %v1654
        %v1656 = vrot.slane %v1456, 1
        %v1657 = vsel %vm1652, %v1654, %v1656
        %1658 = vrot.lane.b32.xlu0 %v1655, 16
        %v1659 = vpop.permute.xlu0 %1658
        %1660 = vrot.lane.b32.xlu0 %v1657, 16
        %v1661 = vpop.permute.xlu0 %1660
        %vm1664 = vcmask 1045504
        %v1665 = vrot.slane %v1455, 2
        %v1666 = vrot.slane %v1448, 2
        %v1667 = vsel %vm1664, %v1665, %v1666
        %v1668 = vrot.slane %v1456, 2
        %v1669 = vsel %vm1664, %v1666, %v1668
        %1670 = vrot.lane.b32.xlu0 %v1667, 32
        %v1671 = vpop.permute.xlu0 %1670
        %1672 = vrot.lane.b32.xlu0 %v1669, 32
        %v1673 = vpop.permute.xlu0 %1672
        %vm1676 = vcmask 1044480
        %v1677 = vrot.slane %v1455, 3
        %v1678 = vrot.slane %v1448, 3
        %v1679 = vsel %vm1676, %v1677, %v1678
        %v1680 = vrot.slane %v1456, 3
        %v1681 = vsel %vm1676, %v1678, %v1680
        %1682 = vrot.lane.b32.xlu0 %v1679, 48
        %v1683 = vpop.permute.xlu0 %1682
        %1684 = vrot.lane.b32.xlu0 %v1681, 48
        %v1685 = vpop.permute.xlu0 %1684
        %vm1688 = vcmask 1043456
        %v1689 = vrot.slane %v1455, 4
        %v1690 = vrot.slane %v1448, 4
        %v1691 = vsel %vm1688, %v1689, %v1690
        %v1692 = vrot.slane %v1456, 4
        %v1693 = vsel %vm1688, %v1690, %v1692
        %1694 = vrot.lane.b32.xlu0 %v1691, 64
        %v1695 = vpop.permute.xlu0 %1694
        %1696 = vrot.lane.b32.xlu0 %v1693, 64
        %v1697 = vpop.permute.xlu0 %1696
        %v1700 = vrot.slane %v1455, 5
        %v1701 = vrot.slane %v1448, 5
        %v1702 = vsel %vm1454, %v1700, %v1701
        %v1703 = vrot.slane %v1456, 5
        %v1704 = vsel %vm1454, %v1701, %v1703
        %1705 = vrot.lane.b32.xlu0 %v1702, 80
        %v1706 = vpop.permute.xlu0 %1705
        %1707 = vrot.lane.b32.xlu0 %v1704, 80
        %v1708 = vpop.permute.xlu0 %1707
        %vm1711 = vcmask 1041408
        %v1712 = vrot.slane %v1455, 6
        %v1713 = vrot.slane %v1448, 6
        %v1714 = vsel %vm1711, %v1712, %v1713
        %v1715 = vrot.slane %v1456, 6
        %v1716 = vsel %vm1711, %v1713, %v1715
        %1717 = vrot.lane.b32.xlu0 %v1714, 96
        %v1718 = vpop.permute.xlu0 %1717
        %1719 = vrot.lane.b32.xlu0 %v1716, 96
        %v1720 = vpop.permute.xlu0 %1719
        %1724 = vrot.lane.b32.xlu0 %v1648, 112
        %v1725 = vpop.permute.xlu0 %1724
        %1726 = vrot.lane.b32.xlu0 %v1643, 112
        %v1727 = vpop.permute.xlu0 %1726
        %v1731 = vrot.slane %v1648, 1
        %v1732 = vrot.slane %v1643, 1
        %v1733 = vsel %vm1652, %v1731, %v1732
        %v1734 = vrot.slane %v1649, 1
        %v1735 = vsel %vm1652, %v1732, %v1734
        %v1738 = vrot.slane %v1648, 2
        %v1739 = vrot.slane %v1643, 2
        %v1740 = vsel %vm1664, %v1738, %v1739
        %v1741 = vrot.slane %v1649, 2
        %v1742 = vsel %vm1664, %v1739, %v1741
        %1743 = vrot.lane.b32.xlu0 %v1740, 16
        %v1744 = vpop.permute.xlu0 %1743
        %1745 = vrot.lane.b32.xlu0 %v1742, 16
        %v1746 = vpop.permute.xlu0 %1745
        %v1749 = vrot.slane %v1648, 3
        %v1750 = vrot.slane %v1643, 3
        %v1751 = vsel %vm1676, %v1749, %v1750
        %v1752 = vrot.slane %v1649, 3
        %v1753 = vsel %vm1676, %v1750, %v1752
        %1754 = vrot.lane.b32.xlu0 %v1751, 32
        %v1755 = vpop.permute.xlu0 %1754
        %1756 = vrot.lane.b32.xlu0 %v1753, 32
        %v1757 = vpop.permute.xlu0 %1756
        %v1760 = vrot.slane %v1648, 4
        %v1761 = vrot.slane %v1643, 4
        %v1762 = vsel %vm1688, %v1760, %v1761
        %v1763 = vrot.slane %v1649, 4
        %v1764 = vsel %vm1688, %v1761, %v1763
        %1765 = vrot.lane.b32.xlu0 %v1762, 48
        %v1766 = vpop.permute.xlu0 %1765
        %1767 = vrot.lane.b32.xlu0 %v1764, 48
        %v1768 = vpop.permute.xlu0 %1767
        %v1771 = vrot.slane %v1648, 5
        %v1772 = vrot.slane %v1643, 5
        %v1773 = vsel %vm1454, %v1771, %v1772
        %v1774 = vrot.slane %v1649, 5
        %v1775 = vsel %vm1454, %v1772, %v1774
        %1776 = vrot.lane.b32.xlu0 %v1773, 64
        %v1777 = vpop.permute.xlu0 %1776
        %1778 = vrot.lane.b32.xlu0 %v1775, 64
        %v1779 = vpop.permute.xlu0 %1778
        %v1782 = vrot.slane %v1648, 6
        %v1783 = vrot.slane %v1643, 6
        %v1784 = vsel %vm1711, %v1782, %v1783
        %v1785 = vrot.slane %v1649, 6
        %v1786 = vsel %vm1711, %v1783, %v1785
        %1787 = vrot.lane.b32.xlu0 %v1784, 80
        %v1788 = vpop.permute.xlu0 %1787
        %1789 = vrot.lane.b32.xlu0 %v1786, 80
        %v1790 = vpop.permute.xlu0 %1789
        %vm1793 = vcmask 130048
        %v1794 = vsel %vm1793, %v1455, %v1659
        %v1795 = vsel %vm1793, %v1448, %v1661
        %v1796 = vsel %vm828, %v1794, %v1671
        %v1797 = vsel %vm828, %v1795, %v1673
        %vm1798 = vcmask 392192
        %v1799 = vsel %vm1798, %v1796, %v1683
        %v1800 = vsel %vm1798, %v1797, %v1685
        %vm1801 = vcmask 523264
        %v1802 = vsel %vm1801, %v1799, %v1695
        %v1803 = vsel %vm1801, %v1800, %v1697
        %vm1804 = vcmask 654336
        %v1805 = vsel %vm1804, %v1802, %v1706
        %v1806 = vsel %vm1804, %v1803, %v1708
        %vm1807 = vcmask 785408
        %v1808 = vsel %vm1807, %v1805, %v1718
        %v1809 = vsel %vm1807, %v1806, %v1720
        %vm1810 = vcmask 916480
        %v1811 = vsel %vm1810, %v1808, %v1725
        %v1812 = vsel %vm1810, %v1809, %v1727
        %v1813 = vsel %vm1793, %v1733, %v1744
        %v1814 = vsel %vm1793, %v1735, %v1746
        %v1815 = vsel %vm828, %v1813, %v1755
        %v1816 = vsel %vm828, %v1814, %v1757
        %v1817 = vsel %vm1798, %v1815, %v1766
        %v1818 = vsel %vm1798, %v1816, %v1768
        %v1819 = vsel %vm1801, %v1817, %v1777
        %v1820 = vsel %vm1801, %v1818, %v1779
        %v1821 = vsel %vm1804, %v1819, %v1788
        %v1822 = vsel %vm1804, %v1820, %v1790
        %v1823 = vld [vmem:[%s3] sm:$0xff]
        %v1824 = vld [vmem:[%s3 + $0x8] sm:$0xff]
        %v1825 = vld [vmem:[%s3 + $0x10] sm:$0xff]
        %v1826 = vld [vmem:[%s3 + $0x18] sm:$0xff]
        %v1827 = vld [vmem:[%s3 + $0x20] sm:$0xff]
        %v1828 = vld [vmem:[%s3 + $0x28] sm:$0xff]
        %v1829 = vld [vmem:[%s3 + $0x30] sm:$0xff]
        %v1830 = vld [vmem:[%s3 + $0x38] sm:$0xff]
        %v1831 = vld [vmem:[%s3 + $0x40] sm:$0xff]
        %v1832 = vld [vmem:[%s3 + $0x48] sm:$0xff]
        %v1833 = vld [vmem:[%s3 + $0x50] sm:$0xff]
        %v1834 = vld [vmem:[%s3 + $0x58] sm:$0xff]
        %v1835 = vld [vmem:[%s3 + $0x60] sm:$0xff]
        %v1836 = vld [vmem:[%s3 + $0x68] sm:$0xff]
        %v1837 = vld [vmem:[%s3 + $0x70] sm:$0xff]
        %v1838 = vld [vmem:[%s3 + $0x78] sm:$0xff]
        %v1839 = vld [vmem:[%s3 + $0x80] sm:$0xff]
        %v1840 = vld [vmem:[%s3 + $0x88] sm:$0xff]
        %v1841 = vld [vmem:[%s3 + $0x90] sm:$0xff]
        %v1842 = vld [vmem:[%s3 + $0x98] sm:$0xff]
        %v1843 = vld [vmem:[%s3 + $0xa0] sm:$0xff]
        %v1844 = vld [vmem:[%s3 + $0xa8] sm:$0xff]
        %v1845 = vld [vmem:[%s3 + $0xb0] sm:$0xff]
        %v1846 = vld [vmem:[%s3 + $0xb8] sm:$0xff]
        %v1847 = vld [vmem:[%s3 + $0xc0] sm:$0xff]
        %v1848 = vld [vmem:[%s3 + $0xc8] sm:$0xff]
        %v1849 = vld [vmem:[%s3 + $0xd0] sm:$0xff]
        %v1850 = vld [vmem:[%s3 + $0xd8] sm:$0xff]
        %v1852 = vsel %vm1807, %v1821, 0
        %v1855 = vsel %vm1807, %v1822, 0
        %1857 = vmatprep.subr.mxu0 0.0
        %1858 = vmatpush1.msra.mxu0 %v1838
        %1859 = vmatprep.subr.mxu0 0.0
        %1860 = vmatpush1.msra.mxu0 %v1837
        %1861 = vmatprep.subr.mxu0 0.0
        %1862 = vmatpush1.msra.mxu0 %v1836
        %1863 = vmatprep.subr.mxu0 0.0
        %1864 = vmatpush1.msra.mxu0 %v1835
        %1865 = vmatprep.subr.mxu0 0.0
        %1866 = vmatpush1.msra.mxu0 %v1834
        %1867 = vmatprep.subr.mxu0 0.0
        %1868 = vmatpush1.msra.mxu0 %v1833
        %1869 = vmatprep.subr.mxu0 0.0
        %1870 = vmatpush1.msra.mxu0 %v1832
        %1871 = vmatprep.subr.mxu0 0.0
        %1872 = vmatpush1.msra.mxu0 %v1831
        %1873 = vmatprep.subr.mxu0 0.0
        %1874 = vmatpush1.msra.mxu0 %v1830
        %1875 = vmatprep.subr.mxu0 0.0
        %1876 = vmatpush1.msra.mxu0 %v1829
        %1877 = vmatprep.subr.mxu0 0.0
        %1878 = vmatpush1.msra.mxu0 %v1828
        %1879 = vmatprep.subr.mxu0 0.0
        %1880 = vmatpush1.msra.mxu0 %v1827
        %1881 = vmatprep.subr.mxu0 0.0
        %1882 = vmatpush1.msra.mxu0 %v1826
        %1883 = vmatprep.subr.mxu0 0.0
        %1884 = vmatpush1.msra.mxu0 %v1825
        %1885 = vmatprep.subr.mxu0 0.0
        %1886 = vmatpush1.msra.mxu0 %v1824
        %1887 = vmatprep.subr.mxu0 0.0
        %1888 = vmatpush1.msra.mxu0 %v1823
        %1889 = vmatprep.subr.mxu0 0.0
        %1890 = vmatpush2.msra.mxu0 0.0
        %1891 = vmatprep.subr.mxu0 0.0
        %1892 = vmatpush2.msra.mxu0 0.0
        %1893 = vmatprep.subr.mxu0 0.0
        %1894 = vmatpush2.msra.mxu0 0.0
        %1895 = vmatprep.subr.mxu0 0.0
        %1896 = vmatpush2.msra.mxu0 0.0
        %1897 = vmatprep.subr.mxu0 0.0
        %1898 = vmatpush2.msra.mxu0 %v1850
        %1899 = vmatprep.subr.mxu0 0.0
        %1900 = vmatpush2.msra.mxu0 %v1849
        %1901 = vmatprep.subr.mxu0 0.0
        %1902 = vmatpush2.msra.mxu0 %v1848
        %1903 = vmatprep.subr.mxu0 0.0
        %1904 = vmatpush2.msra.mxu0 %v1847
        %1905 = vmatprep.subr.mxu0 0.0
        %1906 = vmatpush2.msra.mxu0 %v1846
        %1907 = vmatprep.subr.mxu0 0.0
        %1908 = vmatpush2.msra.mxu0 %v1845
        %1909 = vmatprep.subr.mxu0 0.0
        %1910 = vmatpush2.msra.mxu0 %v1844
        %1911 = vmatprep.subr.mxu0 0.0
        %1912 = vmatpush2.msra.mxu0 %v1843
        %1913 = vmatprep.subr.mxu0 0.0
        %1914 = vmatpush2.msra.mxu0 %v1842
        %1915 = vmatprep.subr.mxu0 0.0
        %1916 = vmatpush2.msra.mxu0 %v1841
        %1917 = vmatprep.subr.mxu0 0.0
        %1918 = vmatpush2.msra.mxu0 %v1840
        %1919 = vmatprep.subr.mxu0 0.0
        %1920 = vmatpush2.msra.mxu0 %v1839
        %1921 = vmatprep.mubr.f32.mxu0 %v1852
        %1922 = vmatmul.mubr.f32.gmra.mxu0 %v1811
        %v1923 = vpop.f32.mrf.mxu0
        %v1924 = vadd.f32 0.0, %v1923
        %v1925 = vpop.f32.mrf.mxu0
        %1926 = vmatprep.mubr.f32.mxu0 %v1855
        %1927 = vmatmul.mubr.f32.gmra.mxu0 %v1812
        %v1928 = vpop.f32.mrf.mxu0
        %v1929 = vadd.f32 0.0, %v1928
        %v1930 = vpop.f32.mrf.mxu0
        %1931 = vdwg.mxu0
        %v1932 = vxor.u32 %v1924, 2147483648
        %v1933 = vxor.u32 %v1929, 2147483648
        %v1934 = vmul.f32 %v1932, 1.442695
        %v1935 = vpow.pop %v1934
        %v1936 = vmul.f32 %v1933, 1.442695
        %v1937 = vpow.pop %v1936
        %v1938 = vadd.f32 %v1935, 1.0
        %v1939 = vadd.f32 %v1937, 1.0
        %v1940 = vrcp.pop %v1938
        %v1941 = vmul.f32 1.0, %v1940
        %v1942 = vrcp.pop %v1939
        %v1943 = vmul.f32 1.0, %v1942
        %v1944 = vlaneseq
        %v1945 = vshrl.u32 %v1944, 7
        %v1946 = vsub.s32 0, %v1945
        %v1947 = vrot.slane %v1941, %v1946
        %1949 = vbcast.lane.b32.xlu0 %v1947, 256
        %v1950 = vpop.permute.xlu0 %1949
        %s1952 = sor.u32 256, 8
        %1953 = vbcast.lane.b32.xlu0 %v1947, %s1952
        %v1954 = vpop.permute.xlu0 %1953
        %v1955 = vlaneseq
        %v1956 = vshrl.u32 %v1955, 7
        %v1957 = vsub.s32 1, %v1956
        %v1958 = vrot.slane %v1941, %v1957
        %1960 = vbcast.lane.b32.xlu0 %v1958, 256
        %v1961 = vpop.permute.xlu0 %1960
        %s1963 = sor.u32 256, 8
        %1964 = vbcast.lane.b32.xlu0 %v1958, %s1963
        %v1965 = vpop.permute.xlu0 %1964
        %v1966 = vlaneseq
        %v1967 = vshrl.u32 %v1966, 7
        %v1968 = vsub.s32 2, %v1967
        %v1969 = vrot.slane %v1941, %v1968
        %1971 = vbcast.lane.b32.xlu0 %v1969, 256
        %v1972 = vpop.permute.xlu0 %1971
        %s1974 = sor.u32 256, 8
        %1975 = vbcast.lane.b32.xlu0 %v1969, %s1974
        %v1976 = vpop.permute.xlu0 %1975
        %v1977 = vlaneseq
        %v1978 = vshrl.u32 %v1977, 7
        %v1979 = vsub.s32 3, %v1978
        %v1980 = vrot.slane %v1941, %v1979
        %1982 = vbcast.lane.b32.xlu0 %v1980, 256
        %v1983 = vpop.permute.xlu0 %1982
        %s1985 = sor.u32 256, 8
        %1986 = vbcast.lane.b32.xlu0 %v1980, %s1985
        %v1987 = vpop.permute.xlu0 %1986
        %v1988 = vlaneseq
        %v1989 = vshrl.u32 %v1988, 7
        %v1990 = vsub.s32 4, %v1989
        %v1991 = vrot.slane %v1941, %v1990
        %1993 = vbcast.lane.b32.xlu0 %v1991, 256
        %v1994 = vpop.permute.xlu0 %1993
        %s1996 = sor.u32 256, 8
        %1997 = vbcast.lane.b32.xlu0 %v1991, %s1996
        %v1998 = vpop.permute.xlu0 %1997
        %v1999 = vlaneseq
        %v2000 = vshrl.u32 %v1999, 7
        %v2001 = vsub.s32 5, %v2000
        %v2002 = vrot.slane %v1941, %v2001
        %2004 = vbcast.lane.b32.xlu0 %v2002, 256
        %v2005 = vpop.permute.xlu0 %2004
        %s2007 = sor.u32 256, 8
        %2008 = vbcast.lane.b32.xlu0 %v2002, %s2007
        %v2009 = vpop.permute.xlu0 %2008
        %v2010 = vlaneseq
        %v2011 = vshrl.u32 %v2010, 7
        %v2012 = vsub.s32 6, %v2011
        %v2013 = vrot.slane %v1941, %v2012
        %2015 = vbcast.lane.b32.xlu0 %v2013, 256
        %v2016 = vpop.permute.xlu0 %2015
        %s2018 = sor.u32 256, 8
        %2019 = vbcast.lane.b32.xlu0 %v2013, %s2018
        %v2020 = vpop.permute.xlu0 %2019
        %v2021 = vlaneseq
        %v2022 = vshrl.u32 %v2021, 7
        %v2023 = vsub.s32 7, %v2022
        %v2024 = vrot.slane %v1941, %v2023
        %2026 = vbcast.lane.b32.xlu0 %v2024, 256
        %v2027 = vpop.permute.xlu0 %2026
        %s2029 = sor.u32 256, 8
        %2030 = vbcast.lane.b32.xlu0 %v2024, %s2029
        %v2031 = vpop.permute.xlu0 %2030
        %v2032 = vlaneseq
        %v2033 = vshrl.u32 %v2032, 7
        %v2034 = vsub.s32 0, %v2033
        %v2035 = vrot.slane %v1943, %v2034
        %2037 = vbcast.lane.b32.xlu0 %v2035, 256
        %v2038 = vpop.permute.xlu0 %2037
        %s2040 = sor.u32 256, 8
        %2041 = vbcast.lane.b32.xlu0 %v2035, %s2040
        %v2042 = vpop.permute.xlu0 %2041
        %v2043 = vlaneseq
        %v2044 = vshrl.u32 %v2043, 7
        %v2045 = vsub.s32 1, %v2044
        %v2046 = vrot.slane %v1943, %v2045
        %2048 = vbcast.lane.b32.xlu0 %v2046, 256
        %v2049 = vpop.permute.xlu0 %2048
        %s2051 = sor.u32 256, 8
        %2052 = vbcast.lane.b32.xlu0 %v2046, %s2051
        %v2053 = vpop.permute.xlu0 %2052
        %v2054 = vlaneseq
        %v2055 = vshrl.u32 %v2054, 7
        %v2056 = vsub.s32 2, %v2055
        %v2057 = vrot.slane %v1943, %v2056
        %2059 = vbcast.lane.b32.xlu0 %v2057, 256
        %v2060 = vpop.permute.xlu0 %2059
        %s2062 = sor.u32 256, 8
        %2063 = vbcast.lane.b32.xlu0 %v2057, %s2062
        %v2064 = vpop.permute.xlu0 %2063
        %v2065 = vlaneseq
        %v2066 = vshrl.u32 %v2065, 7
        %v2067 = vsub.s32 3, %v2066
        %v2068 = vrot.slane %v1943, %v2067
        %2070 = vbcast.lane.b32.xlu0 %v2068, 256
        %v2071 = vpop.permute.xlu0 %2070
        %s2073 = sor.u32 256, 8
        %2074 = vbcast.lane.b32.xlu0 %v2068, %s2073
        %v2075 = vpop.permute.xlu0 %2074
        %v2076 = vlaneseq
        %v2077 = vshrl.u32 %v2076, 7
        %v2078 = vsub.s32 4, %v2077
        %v2079 = vrot.slane %v1943, %v2078
        %2081 = vbcast.lane.b32.xlu0 %v2079, 256
        %v2082 = vpop.permute.xlu0 %2081
        %s2084 = sor.u32 256, 8
        %2085 = vbcast.lane.b32.xlu0 %v2079, %s2084
        %v2086 = vpop.permute.xlu0 %2085
        %v2087 = vlaneseq
        %v2088 = vshrl.u32 %v2087, 7
        %v2089 = vsub.s32 5, %v2088
        %v2090 = vrot.slane %v1943, %v2089
        %2092 = vbcast.lane.b32.xlu0 %v2090, 256
        %v2093 = vpop.permute.xlu0 %2092
        %s2095 = sor.u32 256, 8
        %2096 = vbcast.lane.b32.xlu0 %v2090, %s2095
        %v2097 = vpop.permute.xlu0 %2096
        %v2098 = vlaneseq
        %v2099 = vshrl.u32 %v2098, 7
        %v2100 = vsub.s32 6, %v2099
        %v2101 = vrot.slane %v1943, %v2100
        %2103 = vbcast.lane.b32.xlu0 %v2101, 256
        %v2104 = vpop.permute.xlu0 %2103
        %s2106 = sor.u32 256, 8
        %2107 = vbcast.lane.b32.xlu0 %v2101, %s2106
        %v2108 = vpop.permute.xlu0 %2107
        %v2109 = vlaneseq
        %v2110 = vshrl.u32 %v2109, 7
        %v2111 = vsub.s32 7, %v2110
        %v2112 = vrot.slane %v1943, %v2111
        %2114 = vbcast.lane.b32.xlu0 %v2112, 256
        %v2115 = vpop.permute.xlu0 %2114
        %s2117 = sor.u32 256, 8
        %2118 = vbcast.lane.b32.xlu0 %v2112, %s2117
        %v2119 = vpop.permute.xlu0 %2118
        %v2120 = vmul.f32 %v995, %v1950
        %v2121 = vmul.f32 %v996, %v1954
        %v2122 = vmul.f32 %v997, %v1961
        %v2123 = vmul.f32 %v998, %v1965
        %v2124 = vmul.f32 %v999, %v1972
        %v2125 = vmul.f32 %v1000, %v1976
        %v2126 = vmul.f32 %v1001, %v1983
        %v2127 = vmul.f32 %v1002, %v1987
        %v2128 = vmul.f32 %v1003, %v1994
        %v2129 = vmul.f32 %v1004, %v1998
        %v2130 = vmul.f32 %v1005, %v2005
        %v2131 = vmul.f32 %v1006, %v2009
        %v2132 = vmul.f32 %v1007, %v2016
        %v2133 = vmul.f32 %v1008, %v2020
        %v2134 = vmul.f32 %v1009, %v2027
        %v2135 = vmul.f32 %v1010, %v2031
        %v2136 = vmul.f32 %v1011, %v2038
        %v2137 = vmul.f32 %v1012, %v2042
        %v2138 = vmul.f32 %v1013, %v2049
        %v2139 = vmul.f32 %v1014, %v2053
        %v2140 = vmul.f32 %v1015, %v2060
        %v2141 = vmul.f32 %v1016, %v2064
        %v2142 = vmul.f32 %v1017, %v2071
        %v2143 = vmul.f32 %v1018, %v2075
        %v2144 = vmul.f32 %v1019, %v2082
        %v2145 = vmul.f32 %v1020, %v2086
        %v2146 = vmul.f32 %v1021, %v2093
        %v2147 = vmul.f32 %v1022, %v2097
        %v2148 = vmul.f32 %v1023, %v2104
        %v2149 = vmul.f32 %v1024, %v2108
        %v2150 = vmul.f32 %v1025, %v2115
        %v2151 = vmul.f32 %v1026, %v2119
        %v2152 = vcombine.low %v2120, %v2124
        %v2153 = vcombine.high %v2120, %v2124
        %v2155 = vunpack.c.l.s4 1983009808
        %v2156 = vunpack.c.0.s8 %v2155
        %v2157 = vlaneseq
        %v2158 = vshrl.u32 %v2157, 7
        %v2159 = vsub.s32 %v2156, %v2158
        %v2160 = vrot.slane %v2152, %v2159
        %v2162 = vunpack.c.l.s4 1983009808
        %v2163 = vunpack.c.0.s8 %v2162
        %v2164 = vlaneseq
        %v2165 = vshrl.u32 %v2164, 7
        %v2166 = vsub.s32 %v2163, %v2165
        %v2167 = vrot.slane %v2153, %v2166
        %v2168 = vcombine.low %v2122, %v2126
        %v2169 = vcombine.high %v2122, %v2126
        %v2171 = vunpack.c.l.s4 1983009808
        %v2172 = vunpack.c.0.s8 %v2171
        %v2173 = vlaneseq
        %v2174 = vshrl.u32 %v2173, 7
        %v2175 = vsub.s32 %v2172, %v2174
        %v2176 = vrot.slane %v2168, %v2175
        %v2178 = vunpack.c.l.s4 1983009808
        %v2179 = vunpack.c.0.s8 %v2178
        %v2180 = vlaneseq
        %v2181 = vshrl.u32 %v2180, 7
        %v2182 = vsub.s32 %v2179, %v2181
        %v2183 = vrot.slane %v2169, %v2182
        %v2184 = vcombine.low %v2128, %v2132
        %v2185 = vcombine.high %v2128, %v2132
        %v2187 = vunpack.c.l.s4 1983009808
        %v2188 = vunpack.c.0.s8 %v2187
        %v2189 = vlaneseq
        %v2190 = vshrl.u32 %v2189, 7
        %v2191 = vsub.s32 %v2188, %v2190
        %v2192 = vrot.slane %v2184, %v2191
        %v2194 = vunpack.c.l.s4 1983009808
        %v2195 = vunpack.c.0.s8 %v2194
        %v2196 = vlaneseq
        %v2197 = vshrl.u32 %v2196, 7
        %v2198 = vsub.s32 %v2195, %v2197
        %v2199 = vrot.slane %v2185, %v2198
        %v2200 = vcombine.low %v2130, %v2134
        %v2201 = vcombine.high %v2130, %v2134
        %v2203 = vunpack.c.l.s4 1983009808
        %v2204 = vunpack.c.0.s8 %v2203
        %v2205 = vlaneseq
        %v2206 = vshrl.u32 %v2205, 7
        %v2207 = vsub.s32 %v2204, %v2206
        %v2208 = vrot.slane %v2200, %v2207
        %v2210 = vunpack.c.l.s4 1983009808
        %v2211 = vunpack.c.0.s8 %v2210
        %v2212 = vlaneseq
        %v2213 = vshrl.u32 %v2212, 7
        %v2214 = vsub.s32 %v2211, %v2213
        %v2215 = vrot.slane %v2201, %v2214
        %v2216 = vcombine.low %v2160, %v2176
        %v2217 = vcombine.high %v2160, %v2176
        %v2219 = vunpack.c.l.s4 1934713408
        %v2220 = vunpack.c.0.s8 %v2219
        %v2221 = vlaneseq
        %v2222 = vshrl.u32 %v2221, 7
        %v2223 = vsub.s32 %v2220, %v2222
        %v2224 = vrot.slane %v2216, %v2223
        %v2226 = vunpack.c.l.s4 1934713408
        %v2227 = vunpack.c.0.s8 %v2226
        %v2228 = vlaneseq
        %v2229 = vshrl.u32 %v2228, 7
        %v2230 = vsub.s32 %v2227, %v2229
        %v2231 = vrot.slane %v2217, %v2230
        %v2232 = vcombine.low %v2167, %v2183
        %v2233 = vcombine.high %v2167, %v2183
        %v2235 = vunpack.c.l.s4 1934713408
        %v2236 = vunpack.c.0.s8 %v2235
        %v2237 = vlaneseq
        %v2238 = vshrl.u32 %v2237, 7
        %v2239 = vsub.s32 %v2236, %v2238
        %v2240 = vrot.slane %v2232, %v2239
        %v2242 = vunpack.c.l.s4 1934713408
        %v2243 = vunpack.c.0.s8 %v2242
        %v2244 = vlaneseq
        %v2245 = vshrl.u32 %v2244, 7
        %v2246 = vsub.s32 %v2243, %v2245
        %v2247 = vrot.slane %v2233, %v2246
        %v2248 = vcombine.low %v2192, %v2208
        %v2249 = vcombine.high %v2192, %v2208
        %v2251 = vunpack.c.l.s4 1934713408
        %v2252 = vunpack.c.0.s8 %v2251
        %v2253 = vlaneseq
        %v2254 = vshrl.u32 %v2253, 7
        %v2255 = vsub.s32 %v2252, %v2254
        %v2256 = vrot.slane %v2248, %v2255
        %v2258 = vunpack.c.l.s4 1934713408
        %v2259 = vunpack.c.0.s8 %v2258
        %v2260 = vlaneseq
        %v2261 = vshrl.u32 %v2260, 7
        %v2262 = vsub.s32 %v2259, %v2261
        %v2263 = vrot.slane %v2249, %v2262
        %v2264 = vcombine.low %v2199, %v2215
        %v2265 = vcombine.high %v2199, %v2215
        %v2267 = vunpack.c.l.s4 1934713408
        %v2268 = vunpack.c.0.s8 %v2267
        %v2269 = vlaneseq
        %v2270 = vshrl.u32 %v2269, 7
        %v2271 = vsub.s32 %v2268, %v2270
        %v2272 = vrot.slane %v2264, %v2271
        %v2274 = vunpack.c.l.s4 1934713408
        %v2275 = vunpack.c.0.s8 %v2274
        %v2276 = vlaneseq
        %v2277 = vshrl.u32 %v2276, 7
        %v2278 = vsub.s32 %v2275, %v2277
        %v2279 = vrot.slane %v2265, %v2278
        %v2280 = vcombine.low %v2224, %v2256
        %v2281 = vcombine.high %v2224, %v2256
        %v2282 = vcombine.low %v2231, %v2263
        %v2283 = vcombine.high %v2231, %v2263
        %v2284 = vcombine.low %v2240, %v2272
        %v2285 = vcombine.high %v2240, %v2272
        %v2286 = vcombine.low %v2247, %v2279
        %v2287 = vcombine.high %v2247, %v2279
        %v2288 = vcombine.low %v2136, %v2140
        %v2289 = vcombine.high %v2136, %v2140
        %v2291 = vunpack.c.l.s4 1983009808
        %v2292 = vunpack.c.0.s8 %v2291
        %v2293 = vlaneseq
        %v2294 = vshrl.u32 %v2293, 7
        %v2295 = vsub.s32 %v2292, %v2294
        %v2296 = vrot.slane %v2288, %v2295
        %v2298 = vunpack.c.l.s4 1983009808
        %v2299 = vunpack.c.0.s8 %v2298
        %v2300 = vlaneseq
        %v2301 = vshrl.u32 %v2300, 7
        %v2302 = vsub.s32 %v2299, %v2301
        %v2303 = vrot.slane %v2289, %v2302
        %v2304 = vcombine.low %v2138, %v2142
        %v2305 = vcombine.high %v2138, %v2142
        %v2307 = vunpack.c.l.s4 1983009808
        %v2308 = vunpack.c.0.s8 %v2307
        %v2309 = vlaneseq
        %v2310 = vshrl.u32 %v2309, 7
        %v2311 = vsub.s32 %v2308, %v2310
        %v2312 = vrot.slane %v2304, %v2311
        %v2314 = vunpack.c.l.s4 1983009808
        %v2315 = vunpack.c.0.s8 %v2314
        %v2316 = vlaneseq
        %v2317 = vshrl.u32 %v2316, 7
        %v2318 = vsub.s32 %v2315, %v2317
        %v2319 = vrot.slane %v2305, %v2318
        %v2320 = vcombine.low %v2144, %v2148
        %v2321 = vcombine.high %v2144, %v2148
        %v2323 = vunpack.c.l.s4 1983009808
        %v2324 = vunpack.c.0.s8 %v2323
        %v2325 = vlaneseq
        %v2326 = vshrl.u32 %v2325, 7
        %v2327 = vsub.s32 %v2324, %v2326
        %v2328 = vrot.slane %v2320, %v2327
        %v2330 = vunpack.c.l.s4 1983009808
        %v2331 = vunpack.c.0.s8 %v2330
        %v2332 = vlaneseq
        %v2333 = vshrl.u32 %v2332, 7
        %v2334 = vsub.s32 %v2331, %v2333
        %v2335 = vrot.slane %v2321, %v2334
        %v2336 = vcombine.low %v2146, %v2150
        %v2337 = vcombine.high %v2146, %v2150
        %v2339 = vunpack.c.l.s4 1983009808
        %v2340 = vunpack.c.0.s8 %v2339
        %v2341 = vlaneseq
        %v2342 = vshrl.u32 %v2341, 7
        %v2343 = vsub.s32 %v2340, %v2342
        %v2344 = vrot.slane %v2336, %v2343
        %v2346 = vunpack.c.l.s4 1983009808
        %v2347 = vunpack.c.0.s8 %v2346
        %v2348 = vlaneseq
        %v2349 = vshrl.u32 %v2348, 7
        %v2350 = vsub.s32 %v2347, %v2349
        %v2351 = vrot.slane %v2337, %v2350
        %v2352 = vcombine.low %v2296, %v2312
        %v2353 = vcombine.high %v2296, %v2312
        %v2355 = vunpack.c.l.s4 1934713408
        %v2356 = vunpack.c.0.s8 %v2355
        %v2357 = vlaneseq
        %v2358 = vshrl.u32 %v2357, 7
        %v2359 = vsub.s32 %v2356, %v2358
        %v2360 = vrot.slane %v2352, %v2359
        %v2362 = vunpack.c.l.s4 1934713408
        %v2363 = vunpack.c.0.s8 %v2362
        %v2364 = vlaneseq
        %v2365 = vshrl.u32 %v2364, 7
        %v2366 = vsub.s32 %v2363, %v2365
        %v2367 = vrot.slane %v2353, %v2366
        %v2368 = vcombine.low %v2303, %v2319
        %v2369 = vcombine.high %v2303, %v2319
        %v2371 = vunpack.c.l.s4 1934713408
        %v2372 = vunpack.c.0.s8 %v2371
        %v2373 = vlaneseq
        %v2374 = vshrl.u32 %v2373, 7
        %v2375 = vsub.s32 %v2372, %v2374
        %v2376 = vrot.slane %v2368, %v2375
        %v2378 = vunpack.c.l.s4 1934713408
        %v2379 = vunpack.c.0.s8 %v2378
        %v2380 = vlaneseq
        %v2381 = vshrl.u32 %v2380, 7
        %v2382 = vsub.s32 %v2379, %v2381
        %v2383 = vrot.slane %v2369, %v2382
        %v2384 = vcombine.low %v2328, %v2344
        %v2385 = vcombine.high %v2328, %v2344
        %v2387 = vunpack.c.l.s4 1934713408
        %v2388 = vunpack.c.0.s8 %v2387
        %v2389 = vlaneseq
        %v2390 = vshrl.u32 %v2389, 7
        %v2391 = vsub.s32 %v2388, %v2390
        %v2392 = vrot.slane %v2384, %v2391
        %v2394 = vunpack.c.l.s4 1934713408
        %v2395 = vunpack.c.0.s8 %v2394
        %v2396 = vlaneseq
        %v2397 = vshrl.u32 %v2396, 7
        %v2398 = vsub.s32 %v2395, %v2397
        %v2399 = vrot.slane %v2385, %v2398
        %v2400 = vcombine.low %v2335, %v2351
        %v2401 = vcombine.high %v2335, %v2351
        %v2403 = vunpack.c.l.s4 1934713408
        %v2404 = vunpack.c.0.s8 %v2403
        %v2405 = vlaneseq
        %v2406 = vshrl.u32 %v2405, 7
        %v2407 = vsub.s32 %v2404, %v2406
        %v2408 = vrot.slane %v2400, %v2407
        %v2410 = vunpack.c.l.s4 1934713408
        %v2411 = vunpack.c.0.s8 %v2410
        %v2412 = vlaneseq
        %v2413 = vshrl.u32 %v2412, 7
        %v2414 = vsub.s32 %v2411, %v2413
        %v2415 = vrot.slane %v2401, %v2414
        %v2416 = vcombine.low %v2360, %v2392
        %v2417 = vcombine.high %v2360, %v2392
        %v2418 = vcombine.low %v2367, %v2399
        %v2419 = vcombine.high %v2367, %v2399
        %v2420 = vcombine.low %v2376, %v2408
        %v2421 = vcombine.high %v2376, %v2408
        %v2422 = vcombine.low %v2383, %v2415
        %v2423 = vcombine.high %v2383, %v2415
        %v2424 = vcombine.low %v2121, %v2125
        %v2425 = vcombine.high %v2121, %v2125
        %v2427 = vunpack.c.l.s4 1983009808
        %v2428 = vunpack.c.0.s8 %v2427
        %v2429 = vlaneseq
        %v2430 = vshrl.u32 %v2429, 7
        %v2431 = vsub.s32 %v2428, %v2430
        %v2432 = vrot.slane %v2424, %v2431
        %v2434 = vunpack.c.l.s4 1983009808
        %v2435 = vunpack.c.0.s8 %v2434
        %v2436 = vlaneseq
        %v2437 = vshrl.u32 %v2436, 7
        %v2438 = vsub.s32 %v2435, %v2437
        %v2439 = vrot.slane %v2425, %v2438
        %v2440 = vcombine.low %v2123, %v2127
        %v2441 = vcombine.high %v2123, %v2127
        %v2443 = vunpack.c.l.s4 1983009808
        %v2444 = vunpack.c.0.s8 %v2443
        %v2445 = vlaneseq
        %v2446 = vshrl.u32 %v2445, 7
        %v2447 = vsub.s32 %v2444, %v2446
        %v2448 = vrot.slane %v2440, %v2447
        %v2450 = vunpack.c.l.s4 1983009808
        %v2451 = vunpack.c.0.s8 %v2450
        %v2452 = vlaneseq
        %v2453 = vshrl.u32 %v2452, 7
        %v2454 = vsub.s32 %v2451, %v2453
        %v2455 = vrot.slane %v2441, %v2454
        %v2456 = vcombine.low %v2129, %v2133
        %v2457 = vcombine.high %v2129, %v2133
        %v2459 = vunpack.c.l.s4 1983009808
        %v2460 = vunpack.c.0.s8 %v2459
        %v2461 = vlaneseq
        %v2462 = vshrl.u32 %v2461, 7
        %v2463 = vsub.s32 %v2460, %v2462
        %v2464 = vrot.slane %v2456, %v2463
        %v2466 = vunpack.c.l.s4 1983009808
        %v2467 = vunpack.c.0.s8 %v2466
        %v2468 = vlaneseq
        %v2469 = vshrl.u32 %v2468, 7
        %v2470 = vsub.s32 %v2467, %v2469
        %v2471 = vrot.slane %v2457, %v2470
        %v2472 = vcombine.low %v2131, %v2135
        %v2473 = vcombine.high %v2131, %v2135
        %v2475 = vunpack.c.l.s4 1983009808
        %v2476 = vunpack.c.0.s8 %v2475
        %v2477 = vlaneseq
        %v2478 = vshrl.u32 %v2477, 7
        %v2479 = vsub.s32 %v2476, %v2478
        %v2480 = vrot.slane %v2472, %v2479
        %v2482 = vunpack.c.l.s4 1983009808
        %v2483 = vunpack.c.0.s8 %v2482
        %v2484 = vlaneseq
        %v2485 = vshrl.u32 %v2484, 7
        %v2486 = vsub.s32 %v2483, %v2485
        %v2487 = vrot.slane %v2473, %v2486
        %v2488 = vcombine.low %v2432, %v2448
        %v2489 = vcombine.high %v2432, %v2448
        %v2491 = vunpack.c.l.s4 1934713408
        %v2492 = vunpack.c.0.s8 %v2491
        %v2493 = vlaneseq
        %v2494 = vshrl.u32 %v2493, 7
        %v2495 = vsub.s32 %v2492, %v2494
        %v2496 = vrot.slane %v2488, %v2495
        %v2498 = vunpack.c.l.s4 1934713408
        %v2499 = vunpack.c.0.s8 %v2498
        %v2500 = vlaneseq
        %v2501 = vshrl.u32 %v2500, 7
        %v2502 = vsub.s32 %v2499, %v2501
        %v2503 = vrot.slane %v2489, %v2502
        %v2504 = vcombine.low %v2439, %v2455
        %v2505 = vcombine.high %v2439, %v2455
        %v2507 = vunpack.c.l.s4 1934713408
        %v2508 = vunpack.c.0.s8 %v2507
        %v2509 = vlaneseq
        %v2510 = vshrl.u32 %v2509, 7
        %v2511 = vsub.s32 %v2508, %v2510
        %v2512 = vrot.slane %v2504, %v2511
        %v2514 = vunpack.c.l.s4 1934713408
        %v2515 = vunpack.c.0.s8 %v2514
        %v2516 = vlaneseq
        %v2517 = vshrl.u32 %v2516, 7
        %v2518 = vsub.s32 %v2515, %v2517
        %v2519 = vrot.slane %v2505, %v2518
        %v2520 = vcombine.low %v2464, %v2480
        %v2521 = vcombine.high %v2464, %v2480
        %v2523 = vunpack.c.l.s4 1934713408
        %v2524 = vunpack.c.0.s8 %v2523
        %v2525 = vlaneseq
        %v2526 = vshrl.u32 %v2525, 7
        %v2527 = vsub.s32 %v2524, %v2526
        %v2528 = vrot.slane %v2520, %v2527
        %v2530 = vunpack.c.l.s4 1934713408
        %v2531 = vunpack.c.0.s8 %v2530
        %v2532 = vlaneseq
        %v2533 = vshrl.u32 %v2532, 7
        %v2534 = vsub.s32 %v2531, %v2533
        %v2535 = vrot.slane %v2521, %v2534
        %v2536 = vcombine.low %v2471, %v2487
        %v2537 = vcombine.high %v2471, %v2487
        %v2539 = vunpack.c.l.s4 1934713408
        %v2540 = vunpack.c.0.s8 %v2539
        %v2541 = vlaneseq
        %v2542 = vshrl.u32 %v2541, 7
        %v2543 = vsub.s32 %v2540, %v2542
        %v2544 = vrot.slane %v2536, %v2543
        %v2546 = vunpack.c.l.s4 1934713408
        %v2547 = vunpack.c.0.s8 %v2546
        %v2548 = vlaneseq
        %v2549 = vshrl.u32 %v2548, 7
        %v2550 = vsub.s32 %v2547, %v2549
        %v2551 = vrot.slane %v2537, %v2550
        %v2552 = vcombine.low %v2496, %v2528
        %v2553 = vcombine.high %v2496, %v2528
        %v2554 = vcombine.low %v2503, %v2535
        %v2555 = vcombine.high %v2503, %v2535
        %v2556 = vcombine.low %v2512, %v2544
        %v2557 = vcombine.high %v2512, %v2544
        %v2558 = vcombine.low %v2519, %v2551
        %v2559 = vcombine.high %v2519, %v2551
        %v2560 = vcombine.low %v2137, %v2141
        %v2561 = vcombine.high %v2137, %v2141
        %v2563 = vunpack.c.l.s4 1983009808
        %v2564 = vunpack.c.0.s8 %v2563
        %v2565 = vlaneseq
        %v2566 = vshrl.u32 %v2565, 7
        %v2567 = vsub.s32 %v2564, %v2566
        %v2568 = vrot.slane %v2560, %v2567
        %v2570 = vunpack.c.l.s4 1983009808
        %v2571 = vunpack.c.0.s8 %v2570
        %v2572 = vlaneseq
        %v2573 = vshrl.u32 %v2572, 7
        %v2574 = vsub.s32 %v2571, %v2573
        %v2575 = vrot.slane %v2561, %v2574
        %v2576 = vcombine.low %v2139, %v2143
        %v2577 = vcombine.high %v2139, %v2143
        %v2579 = vunpack.c.l.s4 1983009808
        %v2580 = vunpack.c.0.s8 %v2579
        %v2581 = vlaneseq
        %v2582 = vshrl.u32 %v2581, 7
        %v2583 = vsub.s32 %v2580, %v2582
        %v2584 = vrot.slane %v2576, %v2583
        %v2586 = vunpack.c.l.s4 1983009808
        %v2587 = vunpack.c.0.s8 %v2586
        %v2588 = vlaneseq
        %v2589 = vshrl.u32 %v2588, 7
        %v2590 = vsub.s32 %v2587, %v2589
        %v2591 = vrot.slane %v2577, %v2590
        %v2592 = vcombine.low %v2145, %v2149
        %v2593 = vcombine.high %v2145, %v2149
        %v2595 = vunpack.c.l.s4 1983009808
        %v2596 = vunpack.c.0.s8 %v2595
        %v2597 = vlaneseq
        %v2598 = vshrl.u32 %v2597, 7
        %v2599 = vsub.s32 %v2596, %v2598
        %v2600 = vrot.slane %v2592, %v2599
        %v2602 = vunpack.c.l.s4 1983009808
        %v2603 = vunpack.c.0.s8 %v2602
        %v2604 = vlaneseq
        %v2605 = vshrl.u32 %v2604, 7
        %v2606 = vsub.s32 %v2603, %v2605
        %v2607 = vrot.slane %v2593, %v2606
        %v2608 = vcombine.low %v2147, %v2151
        %v2609 = vcombine.high %v2147, %v2151
        %v2611 = vunpack.c.l.s4 1983009808
        %v2612 = vunpack.c.0.s8 %v2611
        %v2613 = vlaneseq
        %v2614 = vshrl.u32 %v2613, 7
        %v2615 = vsub.s32 %v2612, %v2614
        %v2616 = vrot.slane %v2608, %v2615
        %v2618 = vunpack.c.l.s4 1983009808
        %v2619 = vunpack.c.0.s8 %v2618
        %v2620 = vlaneseq
        %v2621 = vshrl.u32 %v2620, 7
        %v2622 = vsub.s32 %v2619, %v2621
        %v2623 = vrot.slane %v2609, %v2622
        %v2624 = vcombine.low %v2568, %v2584
        %v2625 = vcombine.high %v2568, %v2584
        %v2627 = vunpack.c.l.s4 1934713408
        %v2628 = vunpack.c.0.s8 %v2627
        %v2629 = vlaneseq
        %v2630 = vshrl.u32 %v2629, 7
        %v2631 = vsub.s32 %v2628, %v2630
        %v2632 = vrot.slane %v2624, %v2631
        %v2634 = vunpack.c.l.s4 1934713408
        %v2635 = vunpack.c.0.s8 %v2634
        %v2636 = vlaneseq
        %v2637 = vshrl.u32 %v2636, 7
        %v2638 = vsub.s32 %v2635, %v2637
        %v2639 = vrot.slane %v2625, %v2638
        %v2640 = vcombine.low %v2575, %v2591
        %v2641 = vcombine.high %v2575, %v2591
        %v2643 = vunpack.c.l.s4 1934713408
        %v2644 = vunpack.c.0.s8 %v2643
        %v2645 = vlaneseq
        %v2646 = vshrl.u32 %v2645, 7
        %v2647 = vsub.s32 %v2644, %v2646
        %v2648 = vrot.slane %v2640, %v2647
        %v2650 = vunpack.c.l.s4 1934713408
        %v2651 = vunpack.c.0.s8 %v2650
        %v2652 = vlaneseq
        %v2653 = vshrl.u32 %v2652, 7
        %v2654 = vsub.s32 %v2651, %v2653
        %v2655 = vrot.slane %v2641, %v2654
        %v2656 = vcombine.low %v2600, %v2616
        %v2657 = vcombine.high %v2600, %v2616
        %v2659 = vunpack.c.l.s4 1934713408
        %v2660 = vunpack.c.0.s8 %v2659
        %v2661 = vlaneseq
        %v2662 = vshrl.u32 %v2661, 7
        %v2663 = vsub.s32 %v2660, %v2662
        %v2664 = vrot.slane %v2656, %v2663
        %v2666 = vunpack.c.l.s4 1934713408
        %v2667 = vunpack.c.0.s8 %v2666
        %v2668 = vlaneseq
        %v2669 = vshrl.u32 %v2668, 7
        %v2670 = vsub.s32 %v2667, %v2669
        %v2671 = vrot.slane %v2657, %v2670
        %v2672 = vcombine.low %v2607, %v2623
        %v2673 = vcombine.high %v2607, %v2623
        %v2675 = vunpack.c.l.s4 1934713408
        %v2676 = vunpack.c.0.s8 %v2675
        %v2677 = vlaneseq
        %v2678 = vshrl.u32 %v2677, 7
        %v2679 = vsub.s32 %v2676, %v2678
        %v2680 = vrot.slane %v2672, %v2679
        %v2682 = vunpack.c.l.s4 1934713408
        %v2683 = vunpack.c.0.s8 %v2682
        %v2684 = vlaneseq
        %v2685 = vshrl.u32 %v2684, 7
        %v2686 = vsub.s32 %v2683, %v2685
        %v2687 = vrot.slane %v2673, %v2686
        %v2688 = vcombine.low %v2632, %v2664
        %v2689 = vcombine.high %v2632, %v2664
        %v2690 = vcombine.low %v2639, %v2671
        %v2691 = vcombine.high %v2639, %v2671
        %v2692 = vcombine.low %v2648, %v2680
        %v2693 = vcombine.high %v2648, %v2680
        %v2694 = vcombine.low %v2655, %v2687
        %v2695 = vcombine.high %v2655, %v2687
        %2698 = vrot.lane.b32.xlu0 %v2281, 32
        %v2699 = vpop.permute.xlu0 %2698
        %2700 = vrot.lane.b32.xlu0 %v2417, 32
        %v2701 = vpop.permute.xlu0 %2700
        %2706 = vrot.lane.b32.xlu0 %v2282, 64
        %v2707 = vpop.permute.xlu0 %2706
        %2708 = vrot.lane.b32.xlu0 %v2418, 64
        %v2709 = vpop.permute.xlu0 %2708
        %2714 = vrot.lane.b32.xlu0 %v2283, 96
        %v2715 = vpop.permute.xlu0 %2714
        %2716 = vrot.lane.b32.xlu0 %v2419, 96
        %v2717 = vpop.permute.xlu0 %2716
        %2722 = vrot.lane.b32.xlu0 %v2285, 32
        %v2723 = vpop.permute.xlu0 %2722
        %2724 = vrot.lane.b32.xlu0 %v2421, 32
        %v2725 = vpop.permute.xlu0 %2724
        %2730 = vrot.lane.b32.xlu0 %v2286, 64
        %v2731 = vpop.permute.xlu0 %2730
        %2732 = vrot.lane.b32.xlu0 %v2422, 64
        %v2733 = vpop.permute.xlu0 %2732
        %2738 = vrot.lane.b32.xlu0 %v2287, 96
        %v2739 = vpop.permute.xlu0 %2738
        %2740 = vrot.lane.b32.xlu0 %v2423, 96
        %v2741 = vpop.permute.xlu0 %2740
        %2746 = vrot.lane.b32.xlu0 %v2553, 32
        %v2747 = vpop.permute.xlu0 %2746
        %2748 = vrot.lane.b32.xlu0 %v2689, 32
        %v2749 = vpop.permute.xlu0 %2748
        %2754 = vrot.lane.b32.xlu0 %v2554, 64
        %v2755 = vpop.permute.xlu0 %2754
        %2756 = vrot.lane.b32.xlu0 %v2690, 64
        %v2757 = vpop.permute.xlu0 %2756
        %2762 = vrot.lane.b32.xlu0 %v2555, 96
        %v2763 = vpop.permute.xlu0 %2762
        %2764 = vrot.lane.b32.xlu0 %v2691, 96
        %v2765 = vpop.permute.xlu0 %2764
        %2770 = vrot.lane.b32.xlu0 %v2557, 32
        %v2771 = vpop.permute.xlu0 %2770
        %2772 = vrot.lane.b32.xlu0 %v2693, 32
        %v2773 = vpop.permute.xlu0 %2772
        %2778 = vrot.lane.b32.xlu0 %v2558, 64
        %v2779 = vpop.permute.xlu0 %2778
        %2780 = vrot.lane.b32.xlu0 %v2694, 64
        %v2781 = vpop.permute.xlu0 %2780
        %2786 = vrot.lane.b32.xlu0 %v2559, 96
        %v2787 = vpop.permute.xlu0 %2786
        %2788 = vrot.lane.b32.xlu0 %v2695, 96
        %v2789 = vpop.permute.xlu0 %2788
        %v2792 = vsel %vm828, %v2280, %v2699
        %v2793 = vsel %vm828, %v2416, %v2701
        %v2794 = vsel %vm1801, %v2792, %v2707
        %v2795 = vsel %vm1801, %v2793, %v2709
        %v2796 = vsel %vm1807, %v2794, %v2715
        %v2797 = vsel %vm1807, %v2795, %v2717
        %v2798 = vsel %vm828, %v2284, %v2723
        %v2799 = vsel %vm828, %v2420, %v2725
        %v2800 = vsel %vm1801, %v2798, %v2731
        %v2801 = vsel %vm1801, %v2799, %v2733
        %v2802 = vsel %vm1807, %v2800, %v2739
        %v2803 = vsel %vm1807, %v2801, %v2741
        %v2804 = vsel %vm828, %v2552, %v2747
        %v2805 = vsel %vm828, %v2688, %v2749
        %v2806 = vsel %vm1801, %v2804, %v2755
        %v2807 = vsel %vm1801, %v2805, %v2757
        %v2808 = vsel %vm1807, %v2806, %v2763
        %v2809 = vsel %vm1807, %v2807, %v2765
        %v2810 = vsel %vm828, %v2556, %v2771
        %v2811 = vsel %vm828, %v2692, %v2773
        %v2812 = vsel %vm1801, %v2810, %v2779
        %v2813 = vsel %vm1801, %v2811, %v2781
        %v2814 = vsel %vm1807, %v2812, %v2787
        %v2815 = vsel %vm1807, %v2813, %v2789
        %2816 = vst [vmem:[%s190] sm:$0xff] %v2796
        %2817 = vst [vmem:[%s190 + $0x8] sm:$0xff] %v2802
        %2818 = vst [vmem:[%s190 + $0x10] sm:$0xff] %v2808
        %2819 = vst [vmem:[%s190 + $0x18] sm:$0xff] %v2814
        %2820 = vst [vmem:[%s190 + $0x20] sm:$0xff] %v2797
        %2821 = vst [vmem:[%s190 + $0x28] sm:$0xff] %v2803
        %2822 = vst [vmem:[%s190 + $0x30] sm:$0xff] %v2809
        %2823 = vst [vmem:[%s190 + $0x38] sm:$0xff] %v2815
        %s2824 = sand.u32 %s115, 1
        %s2825 = scalar_lea.sflag [#allocation3], %s2824
        %s2826 = sand.u32 %s115, 1
        %s2827 = smul.addr %s2826, 64
        %s2828 = scalar_lea.vmem [#allocation2], %s2827
        // Predicated region
        $region37: #{tpu_custom_call.1} parent=35 // pred_check
          %p2829 = pneg %p125
        $region38: #{tpu_custom_call.1} parent=35 // pred_check_branch
          %2831 = sbr.rel (%p2829) target = $region40
        $region39: #{tpu_custom_call.1} parent=35 // pred_region
          %s2833 = ssub.s32 1024, 1024
          %2834 = vsyncadd %s2825, %s2833
          %s2835 = smul.addr %s18, 8
          %s2836 = smul.addr %s2835, 128
          %s2837 = scalar_lea.hbm %s4, %s2836
          %s2838 = sshll.u32 %s2828, 4
          %s2839 = int_to_ptr.vmem [resolvable:$true] %s2838
          %2844 = dma.vmem_to_hbm [thread:$0]  %s2839, 1024, %s2837, %s2825, 512, 512, 32
        $region40: #{tpu_custom_call.1} parent=35 // pred_fallthru
          _
      $region36: #{tpu_custom_call.1} parent=5 // pred_fallthru
        _
      %p2845 = scmp.le.s32.totalorder 2, %s13
      // Predicated region
      $region41: #{tpu_custom_call.1} parent=5 // pred_check
        %p2846 = pneg %p2845
      $region42: #{tpu_custom_call.1} parent=5 // pred_check_branch
        %2848 = sbr.rel (%p2846) target = $region44
      $region43: #{tpu_custom_call.1} parent=5 // pred_region
        %s2849 = ssub.s32 %s13, 2
        // Predicated region
        $region45: #{tpu_custom_call.1} parent=43 // pred_check
          %p2850 = pneg %p131
        $region46: #{tpu_custom_call.1} parent=43 // pred_check_branch
          %2852 = sbr.rel (%p2850) target = $region48
        $region47: #{tpu_custom_call.1} parent=43 // pred_region
          %s2853 = sand.u32 %s116, 1
          %s2854 = scalar_lea.sflag [#allocation3], %s2853
          %s2855 = sand.u32 %s116, 1
          %s2856 = smul.addr %s2855, 64
          %s2857 = scalar_lea.vmem [#allocation2], %s2856
          %2858 = dma.done %s2854, 1024
        $region48: #{tpu_custom_call.1} parent=43 // pred_fallthru
          _
      $region44: #{tpu_custom_call.1} parent=5 // pred_fallthru
        _
    $region6: #{tpu_custom_call.1} parent=1 // loop_footer
      %s17 = sadd.s32 1, %s13
    $region7: #{tpu_custom_call.1} parent=1 // loop_footer_branch
      %12 = sbr.rel target = $region3
    $region8: #{tpu_custom_call.1} parent=1 // loop_exit
      _
    %2859 = vsyncpa [#allocation3], 1
    %s2860 = scalar_lea.sflag [#allocation3], 1
    %2861 = vsyncpa %s2860, 1

</llo_original>
